<compile_context>
chip_gen: v6e
topology: v6e:2x2x1
jax: 0.10.0
libtpu: 0.0.40
codegen_flags: <defaults>
</compile_context>

<pallas_src>
import functools
import math

import jax
import jax.numpy as jnp
import numpy as np
from jax.experimental import pallas as pl
from jax.experimental.pallas import tpu as pltpu


# ---------------------------------------------------------------------------
# Kernel
# ---------------------------------------------------------------------------
def _mha_kernel(*refs, num_head, fused_qkv, has_mask, attn_dtype, approx_recip):
    """refs layout:
         fused_qkv=True : (x,        w(D,3D),  b(1,3D),  [mask], out)
         fused_qkv=False: (q, k, v,  w(3,D,D), b(3,1,D), [mask], out)
       Activation blocks are (q_tile, D) / (S, D) (batch dim squeezed);
       mask block is (Hm, tq_m, S) int8; out block is (q_tile, D).
    """
    it = iter(refs)
    if fused_qkv:
        x_ref = next(it)
    else:
        q_ref = next(it)
        k_ref = next(it)
        v_ref = next(it)
    w_ref = next(it)
    b_ref = next(it)
    m_ref = next(it) if has_mask else None
    o_ref = next(it)

    tq, D = o_ref.shape
    H = num_head
    hd = D // H
    scale = 1.0 / math.sqrt(hd)

    # ---- projections: one MXU matmul per input block (fused: one total) ----
    if fused_qkv:
        proj = jnp.dot(x_ref[...], w_ref[...],
                       preferred_element_type=jnp.float32) + b_ref[...]   # (S, 3D)
        qp = proj[:, 0:D]
        kp = proj[:, D:2 * D]
        vp = proj[:, 2 * D:3 * D]
    else:
        qp = jnp.dot(q_ref[...], w_ref[0],
                     preferred_element_type=jnp.float32) + b_ref[0]       # (tq, D)
        kp = jnp.dot(k_ref[...], w_ref[1],
                     preferred_element_type=jnp.float32) + b_ref[1]       # (S,  D)
        vp = jnp.dot(v_ref[...], w_ref[2],
                     preferred_element_type=jnp.float32) + b_ref[2]       # (S,  D)

    # Fold 1/sqrt(hd) into Q once (cheaper than scaling every (tq, S) score tile);
    # run the attention matmuls in attn_dtype (bf16 optional) with fp32 accumulation.
    qp = (qp * scale).astype(attn_dtype)
    kp = kp.astype(attn_dtype)
    vp = vp.astype(attn_dtype)

    def split_heads(x2d):
        # (N, H*hd) -> (H, N, hd): static lane slices stacked on a new leading axis.
        return jnp.stack([x2d[:, h * hd:(h + 1) * hd] for h in range(H)], axis=0)

    qh = split_heads(qp)    # (H, tq, hd)
    kh = split_heads(kp)    # (H, S,  hd)
    vh = split_heads(vp)    # (H, S,  hd)

    # All heads in one batched matmul; contracts the head dim of both operands
    # so K is consumed in native layout (no explicit transpose).
    sc = jnp.einsum("hqd,hkd->hqk", qh, kh,
                    preferred_element_type=jnp.float32)                   # (H, tq, S)

    if has_mask:
        # mask block is (Hm, tq_m, S) int8 in its minimal broadcast shape;
        # broadcast happens here, in-register, not in HBM.
        sc = jnp.where(m_ref[...] != 0, jnp.float32(-9999.0), sc)

    # numerically-stable softmax over keys
    sc = sc - jnp.max(sc, axis=-1, keepdims=True)
    p = jnp.exp(sc)
    denom = jnp.sum(p, axis=-1, keepdims=True)
    p = p * pl.reciprocal(denom, approx=approx_recip)

    out = jnp.einsum("hqk,hkd->hqd", p.astype(attn_dtype), vh,
                     preferred_element_type=jnp.float32)                  # (H, tq, hd)

    # One lane-dense (tq, D) store per grid step: heads concatenated back once.
    o_ref[...] = jnp.concatenate([out[h] for h in range(H)],
                                 axis=-1).astype(o_ref.dtype)


# ---------------------------------------------------------------------------
# Planning helpers (generation-aware VMEM budgeting)
# ---------------------------------------------------------------------------
def _tpu_vmem_capacity():
    try:
        return int(pltpu.get_tpu_info().vmem_capacity_bytes)
    except Exception:                                 # hardware query only
        return 64 * 1024 * 1024                       # conservative (v7x-sized)


def _plan_tiling(*, S, D, H, self_attention, act_itemsize, w_itemsize,
                 mask_shape, q_tile):
    vmem_cap = _tpu_vmem_capacity()
    budget = int(min(0.35 * vmem_cap, 48 * 1024 * 1024))   # ~22 MiB v7x, ~45 MiB v6e

    def mask_block_bytes(tq):
        if mask_shape is None:
            return 0
        _, hm, sqm, _ = mask_shape
        tq_m = tq if sqm == S else 1
        return hm * tq_m * S                               # int8

    def estimate(tq):
        fused = self_attention and tq == S
        in_act = (S if fused else tq + 2 * S) * D * act_itemsize
        w_bytes = (3 * D * D + 3 * D) * w_itemsize
        out_bytes = tq * D * act_itemsize
        io = 2 * (in_act + w_bytes + out_bytes + mask_block_bytes(tq))   # x2 buffers
        proj = 4 * D * (tq + 2 * S) * 2        # fp32 projections + head-stacked copies
        score = 4 * H * tq * S * 2             # fp32 scores + probabilities
        acc = 4 * tq * D
        return io + proj + score + acc

    if q_tile is not None:
        tq = int(q_tile)
        if not (tq == S or (S % tq == 0 and tq % 8 == 0)):
            raise ValueError("q_tile must equal S or be a multiple of 8 dividing S")
    else:
        cands = [S] + [t for t in (2048, 1024, 512, 256, 128, 64, 32, 16, 8)
                       if t < S and S % t == 0]
        tq = cands[-1]
        for cand in cands:                                  # descending: first fit = largest
            if estimate(cand) <= budget:
                tq = cand
                break

    est = estimate(tq)
    vmem_limit = int(min(0.9 * vmem_cap, max(32 * 1024 * 1024, 2 * est)))
    return tq, vmem_limit


def _normalize_mask(mask, B, H, S):
    """Normalize to 4D (Bm, Hm, Sqm, S) int8 in minimal broadcast shape
    (numpy/PyTorch right-aligned broadcasting against (B, H, S, S))."""
    m = jnp.asarray(mask)
    if m.ndim > 4:
        raise ValueError("mask must have at most 4 dims")
    while m.ndim < 4:
        m = m[None]
    bm, hm, sqm, skm = m.shape
    if bm not in (1, B) or hm not in (1, H) or sqm not in (1, S) or skm not in (1, S):
        raise ValueError(f"mask shape {m.shape} not broadcastable to {(B, H, S, S)}")
    if skm == 1:                          # keep key (lane) dim dense
        m = jnp.broadcast_to(m, (bm, hm, sqm, S))
    return m.astype(jnp.int8)


# ---------------------------------------------------------------------------
# pallas_call builder + public wrapper
# ---------------------------------------------------------------------------
def _build_call(*, B, S, D, H, tq, fused_qkv, mask_shape, out_dtype, attn_dtype,
                approx_recip, vmem_limit):
    n_q = S // tq
    grid = (B, n_q)

    act_tile = pl.BlockSpec((None, tq, D), lambda b, qi: (b, qi, 0))
    act_full = pl.BlockSpec((None, S, D), lambda b, qi: (b, 0, 0))

    if fused_qkv:
        w_spec = pl.BlockSpec((D, 3 * D), lambda b, qi: (0, 0))
        b_spec = pl.BlockSpec((1, 3 * D), lambda b, qi: (0, 0))
        in_specs = [act_full, w_spec, b_spec]
    else:
        w_spec = pl.BlockSpec((3, D, D), lambda b, qi: (0, 0, 0))
        b_spec = pl.BlockSpec((3, 1, D), lambda b, qi: (0, 0, 0))
        in_specs = [act_tile, act_full, act_full, w_spec, b_spec]

    has_mask = mask_shape is not None
    if has_mask:
        bm, hm, sqm, _ = mask_shape
        tq_m = tq if sqm == S else 1

        def mask_index(b, qi, _bm=bm, _sqm=sqm):
            return (b if _bm != 1 else 0, 0, qi if _sqm != 1 else 0, 0)

        in_specs.append(pl.BlockSpec((None, hm, tq_m, S), mask_index))

    out_spec = pl.BlockSpec((None, tq, D), lambda b, qi: (b, qi, 0))

    kernel = functools.partial(
        _mha_kernel, num_head=H, fused_qkv=fused_qkv, has_mask=has_mask,
        attn_dtype=attn_dtype, approx_recip=approx_recip)

    return pl.pallas_call(
        kernel,
        out_shape=jax.ShapeDtypeStruct((B, S, D), out_dtype),
        grid_spec=pltpu.PrefetchScalarGridSpec(
            num_scalar_prefetch=0,
            grid=grid,
            in_specs=in_specs,
            out_specs=out_spec,
        ),
        compiler_params=pltpu.CompilerParams(
            dimension_semantics=("parallel", "parallel"),
            vmem_limit_bytes=vmem_limit,
        ),
    )


def multi_head_attention(q, k, v, params, *, num_head, mask=None, attn_dtype=None,
                         self_attention=None, q_tile=None):
    """params: wq/wk/wv of shape (D, D) in x@W layout, bq/bk/bv of shape (D,).

    mask follows PyTorch masked_fill semantics (True/nonzero = masked with -9999)
    and is broadcast (right-aligned) against the (B, num_head, S, S) score.
    attn_dtype: dtype for the attention matmuls (defaults to bf16 iff inputs are
    bf16). self_attention: pass True explicitly under jit if q/k/v are the same
    tensor but arrive as distinct tracers (identity check would miss the fused
    QKV path). q_tile: optional q-sequence tile override.
    """
    B, S, D = q.shape
    H = num_head
    assert D % H == 0

    if attn_dtype is None:
        attn_dtype = jnp.bfloat16 if q.dtype == jnp.bfloat16 else jnp.float32
    attn_dtype = jnp.dtype(attn_dtype)
    approx_recip = attn_dtype == jnp.dtype(jnp.bfloat16)

    if self_attention is None:
        self_attention = (q is k) and (k is v)

    mask_arr = _normalize_mask(mask, B, H, S) if mask is not None else None
    mask_shape = None if mask_arr is None else tuple(mask_arr.shape)

    tq, vmem_limit = _plan_tiling(
        S=S, D=D, H=H, self_attention=self_attention,
        act_itemsize=jnp.dtype(q.dtype).itemsize,
        w_itemsize=jnp.dtype(params["wq"].dtype).itemsize,
        mask_shape=mask_shape, q_tile=q_tile)

    fused_qkv = self_attention and (tq == S)

    if fused_qkv:
        w = jnp.concatenate([params["wq"], params["wk"], params["wv"]], axis=1)
        bias = jnp.concatenate(
            [params["bq"], params["bk"], params["bv"]]).reshape(1, 3 * D)
        args = [q, w, bias]
    else:
        w = jnp.stack([params["wq"], params["wk"], params["wv"]])
        bias = jnp.stack([params["bq"], params["bk"], params["bv"]]).reshape(3, 1, D)
        args = [q, k, v, w, bias]
    if mask_arr is not None:
        args.append(mask_arr)

    call = _build_call(B=B, S=S, D=D, H=H, tq=tq, fused_qkv=fused_qkv,
                       mask_shape=mask_shape, out_dtype=q.dtype,
                       attn_dtype=attn_dtype, approx_recip=approx_recip,
                       vmem_limit=vmem_limit)
    return call(*args)


# ---------------------------------------------------------------------------
# Pure-JAX reference (mirrors the PyTorch forward exactly)
# ---------------------------------------------------------------------------
def reference_mha(q, k, v, params, *, num_head, mask=None):
    B, S, D = q.shape
    hd = D // num_head
    qp = q @ params["wq"] + params["bq"]
    kp = k @ params["wk"] + params["bk"]
    vp = v @ params["wv"] + params["bv"]
    qp = qp.reshape(B, S, num_head, hd).transpose(0, 2, 1, 3)
    kp = kp.reshape(B, S, num_head, hd).transpose(0, 2, 1, 3)
    vp = vp.reshape(B, S, num_head, hd).transpose(0, 2, 1, 3)
    score = jnp.einsum("bhqd,bhkd->bhqk", qp, kp) / jnp.sqrt(jnp.float32(hd))
    if mask is not None:
        m = jnp.asarray(mask)
        score = jnp.where(jnp.broadcast_to(m, score.shape), -9999.0, score)
    score = jax.nn.softmax(score, axis=-1)
    out = jnp.einsum("bhqk,bhkd->bhqd", score, vp)
    return out.transpose(0, 2, 1, 3).reshape(B, S, D)


if __name__ == "__main__":
    B, S, D, H = 2, 8, 32, 4

    key = jax.random.PRNGKey(0)
    kq, kk, kv, kwq, kwk, kwv, kbq, kbk, kbv, kq2, kk2, kv2 = jax.random.split(key, 12)

    q = jax.random.normal(kq, (B, S, D), dtype=jnp.float32)
    k = jax.random.normal(kk, (B, S, D), dtype=jnp.float32)
    v = jax.random.normal(kv, (B, S, D), dtype=jnp.float32)

    bound = 1.0 / np.sqrt(D)
    params = {
        # stored already transposed: y = x @ W + b (PyTorch Linear is x @ W.T + b)
        "wq": jax.random.uniform(kwq, (D, D), jnp.float32, -bound, bound),
        "wk": jax.random.uniform(kwk, (D, D), jnp.float32, -bound, bound),
        "wv": jax.random.uniform(kwv, (D, D), jnp.float32, -bound, bound),
        "bq": jax.random.uniform(kbq, (D,), jnp.float32, -bound, bound),
        "bk": jax.random.uniform(kbk, (D,), jnp.float32, -bound, bound),
        "bv": jax.random.uniform(kbv, (D,), jnp.float32, -bound, bound),
    }

    # 1) cross-attention (distinct q / k / v), no mask
    out = jax.block_until_ready(multi_head_attention(q, k, v, params, num_head=H))
    ref = jax.block_until_ready(reference_mha(q, k, v, params, num_head=H))
    np.testing.assert_allclose(np.asarray(out), np.asarray(ref), rtol=1e-5, atol=1e-5)

    # 2) self-attention (fused (D, 3D) QKV projection, single projection matmul)
    out_sa = jax.block_until_ready(multi_head_attention(q, q, q, params, num_head=H))
    ref_sa = jax.block_until_ready(reference_mha(q, q, q, params, num_head=H))
    np.testing.assert_allclose(np.asarray(out_sa), np.asarray(ref_sa),
                               rtol=1e-5, atol=1e-5)

    # 3) masked attention (causal (S, S) bool mask, broadcast in-kernel, int8 DMA)
    causal = jnp.triu(jnp.ones((S, S), dtype=jnp.bool_), 1)
    out_m = jax.block_until_ready(
        multi_head_attention(q, k, v, params, num_head=H, mask=causal))
    ref_m = jax.block_until_ready(
        reference_mha(q, k, v, params, num_head=H, mask=causal))
    np.testing.assert_allclose(np.asarray(out_m), np.asarray(ref_m),
                               rtol=1e-5, atol=1e-5)

    # 4) bf16 attention-matmul path (fp32 inputs, bf16 QK^T / PV, fp32 accum)
    out_bf = jax.block_until_ready(
        multi_head_attention(q, k, v, params, num_head=H, attn_dtype=jnp.bfloat16))
    np.testing.assert_allclose(np.asarray(out_bf), np.asarray(ref),
                               rtol=5e-2, atol=5e-2)

    # 5) q-sequence tiling exercised (S=16, q_tile=8 -> grid (B, 2)), with mask
    S2 = 16
    q2 = jax.random.normal(kq2, (B, S2, D), dtype=jnp.float32)
    k2 = jax.random.normal(kk2, (B, S2, D), dtype=jnp.float32)
    v2 = jax.random.normal(kv2, (B, S2, D), dtype=jnp.float32)
    causal2 = jnp.triu(jnp.ones((S2, S2), dtype=jnp.bool_), 1)
    out_t = jax.block_until_ready(
        multi_head_attention(q2, k2, v2, params, num_head=H, mask=causal2, q_tile=8))
    ref_t = jax.block_until_ready(
        reference_mha(q2, k2, v2, params, num_head=H, mask=causal2))
    np.testing.assert_allclose(np.asarray(out_t), np.asarray(ref_t),
                               rtol=1e-5, atol=1e-5)

    print("KERNEL_OK")
</pallas_src>

<mosaic_0001>
module attributes {stable_mosaic.version = 11 : i64} {
  func.func @_mha_kernel(%arg0: i32, %arg1: i32, %arg2: memref<1x8x32xf32, #tpu.memory_space<vmem>>, %arg3: memref<1x8x32xf32, #tpu.memory_space<vmem>>, %arg4: memref<1x8x32xf32, #tpu.memory_space<vmem>>, %arg5: memref<3x32x32xf32, #tpu.memory_space<vmem>>, %arg6: memref<3x1x32xf32, #tpu.memory_space<vmem>>, %arg7: memref<1x8x32xf32, #tpu.memory_space<vmem>>) attributes {dimension_semantics = [#tpu.dimension_semantics<parallel>, #tpu.dimension_semantics<parallel>], iteration_bounds = array<i64: 2, 1>, scalar_prefetch = 0 : i64, scratch_operands = 0 : i64, tpu.core_type = #tpu.core_type<tc>, window_params = [{transform_indices = @transform_0, window_bounds = array<i64: 1, 8, 32>}, {transform_indices = @transform_1, window_bounds = array<i64: 1, 8, 32>}, {transform_indices = @transform_2, window_bounds = array<i64: 1, 8, 32>}, {pipeline_mode = #tpu.pipeline_mode<synchronous>, transform_indices = @transform_3, window_bounds = array<i64: 3, 32, 32>}, {pipeline_mode = #tpu.pipeline_mode<synchronous>, transform_indices = @transform_4, window_bounds = array<i64: 3, 1, 32>}, {transform_indices = @transform_5, window_bounds = array<i64: 1, 8, 32>}]} {
    %c0 = arith.constant 0 : index
    %c0_0 = arith.constant 0 : index
    %c0_1 = arith.constant 0 : index
    %0 = vector.load %arg2[%c0, %c0_0, %c0_1] : memref<1x8x32xf32, #tpu.memory_space<vmem>>, vector<1x8x32xf32>
    %1 = vector.shape_cast %0 : vector<1x8x32xf32> to vector<8x32xf32>
    %c0_2 = arith.constant 0 : index
    %c0_3 = arith.constant 0 : index
    %c0_4 = arith.constant 0 : index
    %2 = vector.load %arg5[%c0_2, %c0_3, %c0_4] : memref<3x32x32xf32, #tpu.memory_space<vmem>>, vector<1x32x32xf32>
    %3 = vector.shape_cast %2 : vector<1x32x32xf32> to vector<32x32xf32>
    %cst = arith.constant dense<0.000000e+00> : vector<8x32xf32>
    %4 = tpu.matmul %1, %3, %cst {dimension_numbers = #tpu.dot_dimension_numbers<[1], [0], [0], [1], [0, 0, 1, 1], [], []>} : vector<8x32xf32>, vector<32x32xf32>, vector<8x32xf32> -> vector<8x32xf32>
    %c0_5 = arith.constant 0 : index
    %c0_6 = arith.constant 0 : index
    %c0_7 = arith.constant 0 : index
    %5 = vector.load %arg6[%c0_5, %c0_6, %c0_7] : memref<3x1x32xf32, #tpu.memory_space<vmem>>, vector<1x1x32xf32>
    %6 = vector.shape_cast %5 : vector<1x1x32xf32> to vector<1x32xf32>
    %7 = vector.broadcast %6 : vector<1x32xf32> to vector<8x32xf32>
    %8 = arith.addf %4, %7 : vector<8x32xf32>
    %c0_8 = arith.constant 0 : index
    %c0_9 = arith.constant 0 : index
    %c0_10 = arith.constant 0 : index
    %9 = vector.load %arg3[%c0_8, %c0_9, %c0_10] : memref<1x8x32xf32, #tpu.memory_space<vmem>>, vector<1x8x32xf32>
    %10 = vector.shape_cast %9 : vector<1x8x32xf32> to vector<8x32xf32>
    %c1 = arith.constant 1 : index
    %c0_11 = arith.constant 0 : index
    %c0_12 = arith.constant 0 : index
    %11 = vector.load %arg5[%c1, %c0_11, %c0_12] : memref<3x32x32xf32, #tpu.memory_space<vmem>>, vector<1x32x32xf32>
    %12 = vector.shape_cast %11 : vector<1x32x32xf32> to vector<32x32xf32>
    %cst_13 = arith.constant dense<0.000000e+00> : vector<8x32xf32>
    %13 = tpu.matmul %10, %12, %cst_13 {dimension_numbers = #tpu.dot_dimension_numbers<[1], [0], [0], [1], [0, 0, 1, 1], [], []>} : vector<8x32xf32>, vector<32x32xf32>, vector<8x32xf32> -> vector<8x32xf32>
    %c1_14 = arith.constant 1 : index
    %c0_15 = arith.constant 0 : index
    %c0_16 = arith.constant 0 : index
    %14 = vector.load %arg6[%c1_14, %c0_15, %c0_16] : memref<3x1x32xf32, #tpu.memory_space<vmem>>, vector<1x1x32xf32>
    %15 = vector.shape_cast %14 : vector<1x1x32xf32> to vector<1x32xf32>
    %16 = vector.broadcast %15 : vector<1x32xf32> to vector<8x32xf32>
    %17 = arith.addf %13, %16 : vector<8x32xf32>
    %c0_17 = arith.constant 0 : index
    %c0_18 = arith.constant 0 : index
    %c0_19 = arith.constant 0 : index
    %18 = vector.load %arg4[%c0_17, %c0_18, %c0_19] : memref<1x8x32xf32, #tpu.memory_space<vmem>>, vector<1x8x32xf32>
    %19 = vector.shape_cast %18 : vector<1x8x32xf32> to vector<8x32xf32>
    %c2 = arith.constant 2 : index
    %c0_20 = arith.constant 0 : index
    %c0_21 = arith.constant 0 : index
    %20 = vector.load %arg5[%c2, %c0_20, %c0_21] : memref<3x32x32xf32, #tpu.memory_space<vmem>>, vector<1x32x32xf32>
    %21 = vector.shape_cast %20 : vector<1x32x32xf32> to vector<32x32xf32>
    %cst_22 = arith.constant dense<0.000000e+00> : vector<8x32xf32>
    %22 = tpu.matmul %19, %21, %cst_22 {dimension_numbers = #tpu.dot_dimension_numbers<[1], [0], [0], [1], [0, 0, 1, 1], [], []>} : vector<8x32xf32>, vector<32x32xf32>, vector<8x32xf32> -> vector<8x32xf32>
    %c2_23 = arith.constant 2 : index
    %c0_24 = arith.constant 0 : index
    %c0_25 = arith.constant 0 : index
    %23 = vector.load %arg6[%c2_23, %c0_24, %c0_25] : memref<3x1x32xf32, #tpu.memory_space<vmem>>, vector<1x1x32xf32>
    %24 = vector.shape_cast %23 : vector<1x1x32xf32> to vector<1x32xf32>
    %25 = vector.broadcast %24 : vector<1x32xf32> to vector<8x32xf32>
    %26 = arith.addf %22, %25 : vector<8x32xf32>
    %cst_26 = arith.constant 0.353553385 : f32
    %27 = vector.broadcast %cst_26 : f32 to vector<8x32xf32>
    %28 = arith.mulf %8, %27 : vector<8x32xf32>
    %29 = vector.extract_strided_slice %28 {offsets = [0, 0], sizes = [8, 8], strides = [1, 1]} : vector<8x32xf32> to vector<8x8xf32>
    %30 = vector.extract_strided_slice %28 {offsets = [0, 8], sizes = [8, 8], strides = [1, 1]} : vector<8x32xf32> to vector<8x8xf32>
    %31 = vector.extract_strided_slice %28 {offsets = [0, 16], sizes = [8, 8], strides = [1, 1]} : vector<8x32xf32> to vector<8x8xf32>
    %32 = vector.extract_strided_slice %28 {offsets = [0, 24], sizes = [8, 8], strides = [1, 1]} : vector<8x32xf32> to vector<8x8xf32>
    %33 = vector.shape_cast %29 : vector<8x8xf32> to vector<1x8x8xf32>
    %34 = vector.shape_cast %30 : vector<8x8xf32> to vector<1x8x8xf32>
    %35 = vector.shape_cast %31 : vector<8x8xf32> to vector<1x8x8xf32>
    %36 = vector.shape_cast %32 : vector<8x8xf32> to vector<1x8x8xf32>
    %37 = tpu.concatenate %33, %34, %35, %36 in 0 : vector<1x8x8xf32>, vector<1x8x8xf32>, vector<1x8x8xf32>, vector<1x8x8xf32> -> vector<4x8x8xf32>
    %38 = vector.extract_strided_slice %17 {offsets = [0, 0], sizes = [8, 8], strides = [1, 1]} : vector<8x32xf32> to vector<8x8xf32>
    %39 = vector.extract_strided_slice %17 {offsets = [0, 8], sizes = [8, 8], strides = [1, 1]} : vector<8x32xf32> to vector<8x8xf32>
    %40 = vector.extract_strided_slice %17 {offsets = [0, 16], sizes = [8, 8], strides = [1, 1]} : vector<8x32xf32> to vector<8x8xf32>
    %41 = vector.extract_strided_slice %17 {offsets = [0, 24], sizes = [8, 8], strides = [1, 1]} : vector<8x32xf32> to vector<8x8xf32>
    %42 = vector.shape_cast %38 : vector<8x8xf32> to vector<1x8x8xf32>
    %43 = vector.shape_cast %39 : vector<8x8xf32> to vector<1x8x8xf32>
    %44 = vector.shape_cast %40 : vector<8x8xf32> to vector<1x8x8xf32>
    %45 = vector.shape_cast %41 : vector<8x8xf32> to vector<1x8x8xf32>
    %46 = tpu.concatenate %42, %43, %44, %45 in 0 : vector<1x8x8xf32>, vector<1x8x8xf32>, vector<1x8x8xf32>, vector<1x8x8xf32> -> vector<4x8x8xf32>
    %47 = vector.extract_strided_slice %26 {offsets = [0, 0], sizes = [8, 8], strides = [1, 1]} : vector<8x32xf32> to vector<8x8xf32>
    %48 = vector.extract_strided_slice %26 {offsets = [0, 8], sizes = [8, 8], strides = [1, 1]} : vector<8x32xf32> to vector<8x8xf32>
    %49 = vector.extract_strided_slice %26 {offsets = [0, 16], sizes = [8, 8], strides = [1, 1]} : vector<8x32xf32> to vector<8x8xf32>
    %50 = vector.extract_strided_slice %26 {offsets = [0, 24], sizes = [8, 8], strides = [1, 1]} : vector<8x32xf32> to vector<8x8xf32>
    %51 = vector.shape_cast %47 : vector<8x8xf32> to vector<1x8x8xf32>
    %52 = vector.shape_cast %48 : vector<8x8xf32> to vector<1x8x8xf32>
    %53 = vector.shape_cast %49 : vector<8x8xf32> to vector<1x8x8xf32>
    %54 = vector.shape_cast %50 : vector<8x8xf32> to vector<1x8x8xf32>
    %55 = tpu.concatenate %51, %52, %53, %54 in 0 : vector<1x8x8xf32>, vector<1x8x8xf32>, vector<1x8x8xf32>, vector<1x8x8xf32> -> vector<4x8x8xf32>
    "tpu.trace_start"() <{level = 10 : i32, message = "hqd,hkd->hqk"}> : () -> ()
    %cst_27 = arith.constant dense<0.000000e+00> : vector<4x8x8xf32>
    %56 = tpu.matmul %37, %46, %cst_27 {dimension_numbers = #tpu.dot_dimension_numbers<[2], [2], [1], [1], [0, 0, 0, 1, 1, 1], [0], [0]>} : vector<4x8x8xf32>, vector<4x8x8xf32>, vector<4x8x8xf32> -> vector<4x8x8xf32>
    "tpu.trace_stop"() : () -> ()
    %cst_28 = arith.constant dense<0xFF800000> : vector<4x8xf32>
    %57 = vector.multi_reduction <maximumf>, %56, %cst_28 [2] : vector<4x8x8xf32> to vector<4x8xf32>
    %58 = vector.shape_cast %57 : vector<4x8xf32> to vector<4x8x1xf32>
    %59 = vector.broadcast %58 : vector<4x8x1xf32> to vector<4x8x8xf32>
    %60 = arith.subf %56, %59 : vector<4x8x8xf32>
    %61 = math.exp %60 : vector<4x8x8xf32>
    %cst_29 = arith.constant dense<0.000000e+00> : vector<4x8xf32>
    %62 = vector.multi_reduction <add>, %61, %cst_29 [2] : vector<4x8x8xf32> to vector<4x8xf32>
    %63 = vector.shape_cast %62 : vector<4x8xf32> to vector<4x8x1xf32>
    %64 = tpu.reciprocal %63 : vector<4x8x1xf32> -> vector<4x8x1xf32>
    %65 = vector.broadcast %64 : vector<4x8x1xf32> to vector<4x8x8xf32>
    %66 = arith.mulf %61, %65 : vector<4x8x8xf32>
    "tpu.trace_start"() <{level = 10 : i32, message = "hqk,hkd->hqd"}> : () -> ()
    %cst_30 = arith.constant dense<0.000000e+00> : vector<4x8x8xf32>
    %67 = tpu.matmul %66, %55, %cst_30 {dimension_numbers = #tpu.dot_dimension_numbers<[2], [1], [1], [2], [0, 0, 0, 1, 1, 2], [0], [0]>} : vector<4x8x8xf32>, vector<4x8x8xf32>, vector<4x8x8xf32> -> vector<4x8x8xf32>
    "tpu.trace_stop"() : () -> ()
    %68 = vector.extract_strided_slice %67 {offsets = [0, 0, 0], sizes = [1, 8, 8], strides = [1, 1, 1]} : vector<4x8x8xf32> to vector<1x8x8xf32>
    %69 = vector.shape_cast %68 : vector<1x8x8xf32> to vector<8x8xf32>
    %70 = vector.extract_strided_slice %67 {offsets = [1, 0, 0], sizes = [1, 8, 8], strides = [1, 1, 1]} : vector<4x8x8xf32> to vector<1x8x8xf32>
    %71 = vector.shape_cast %70 : vector<1x8x8xf32> to vector<8x8xf32>
    %72 = vector.extract_strided_slice %67 {offsets = [2, 0, 0], sizes = [1, 8, 8], strides = [1, 1, 1]} : vector<4x8x8xf32> to vector<1x8x8xf32>
    %73 = vector.shape_cast %72 : vector<1x8x8xf32> to vector<8x8xf32>
    %74 = vector.extract_strided_slice %67 {offsets = [3, 0, 0], sizes = [1, 8, 8], strides = [1, 1, 1]} : vector<4x8x8xf32> to vector<1x8x8xf32>
    %75 = vector.shape_cast %74 : vector<1x8x8xf32> to vector<8x8xf32>
    %76 = tpu.concatenate %69, %71, %73, %75 in 1 : vector<8x8xf32>, vector<8x8xf32>, vector<8x8xf32>, vector<8x8xf32> -> vector<8x32xf32>
    %c0_31 = arith.constant 0 : index
    %c0_32 = arith.constant 0 : index
    %c0_33 = arith.constant 0 : index
    %77 = vector.load %arg7[%c0_31, %c0_32, %c0_33] : memref<1x8x32xf32, #tpu.memory_space<vmem>>, vector<1x8x32xf32>
    %78 = vector.shape_cast %77 : vector<1x8x32xf32> to vector<8x32xf32>
    %79 = vector.shape_cast %76 : vector<8x32xf32> to vector<1x8x32xf32>
    tpu.vector_store %arg7[%c0_31, %c0_32, %c0_33], %79 {strides = array<i32>} : memref<1x8x32xf32, #tpu.memory_space<vmem>>, vector<1x8x32xf32>,
    return
  }
  func.func @transform_0(%arg0: i32, %arg1: i32) -> (i32, i32, i32) {
    %c0_i32 = arith.constant 0 : i32
    %c0_i32_0 = arith.constant 0 : i32
    return %arg0, %arg1, %c0_i32 : i32, i32, i32
  }
  func.func @transform_1(%arg0: i32, %arg1: i32) -> (i32, i32, i32) {
    %c0_i32 = arith.constant 0 : i32
    %c0_i32_0 = arith.constant 0 : i32
    %c0_i32_1 = arith.constant 0 : i32
    return %arg0, %c0_i32, %c0_i32_0 : i32, i32, i32
  }
  func.func @transform_2(%arg0: i32, %arg1: i32) -> (i32, i32, i32) {
    %c0_i32 = arith.constant 0 : i32
    %c0_i32_0 = arith.constant 0 : i32
    %c0_i32_1 = arith.constant 0 : i32
    return %arg0, %c0_i32, %c0_i32_0 : i32, i32, i32
  }
  func.func @transform_3(%arg0: i32, %arg1: i32) -> (i32, i32, i32) {
    %c0_i32 = arith.constant 0 : i32
    %c0_i32_0 = arith.constant 0 : i32
    %c0_i32_1 = arith.constant 0 : i32
    %c0_i32_2 = arith.constant 0 : i32
    return %c0_i32, %c0_i32_0, %c0_i32_1 : i32, i32, i32
  }
  func.func @transform_4(%arg0: i32, %arg1: i32) -> (i32, i32, i32) {
    %c0_i32 = arith.constant 0 : i32
    %c0_i32_0 = arith.constant 0 : i32
    %c0_i32_1 = arith.constant 0 : i32
    %c0_i32_2 = arith.constant 0 : i32
    return %c0_i32, %c0_i32_0, %c0_i32_1 : i32, i32, i32
  }
  func.func @transform_5(%arg0: i32, %arg1: i32) -> (i32, i32, i32) {
    %c0_i32 = arith.constant 0 : i32
    %c0_i32_0 = arith.constant 0 : i32
    return %arg0, %arg1, %c0_i32 : i32, i32, i32
  }
}

</mosaic_0001>

<llo_original>
// kernel: tpu_custom_call.1
$region0: #{tpu_custom_call.1}
  #allocation0 [shape = 'u32[]', space=smem, size = 0x4, offset = 0x4, fixed_abs, tag = 'smem constant byte address 0x4 - core index']
  #allocation1 [shape = 'u32[144,128]{1,0:T(1,128)}', space=vmem, size = 0x12000, scoped, tag = 'internal scratch']
  %s0 = inlined_call_operand.hbm [shape: f32[2,8,32], index: 0, kind: input, shape index: {}]
  %s1 = inlined_call_operand.hbm [shape: f32[2,8,32], index: 1, kind: input, shape index: {}]
  %s2 = inlined_call_operand.hbm [shape: f32[2,8,32], index: 2, kind: input, shape index: {}]
  %s3 = inlined_call_operand.hbm [shape: f32[3,32,32], index: 3, kind: input, shape index: {}]
  %s4 = inlined_call_operand.vmem [shape: f32[3,1,32], index: 4, kind: input, shape index: {}]
  %s5 = inlined_call_operand.hbm [shape: f32[2,8,32], index: 5, kind: output, shape index: {}]
  %s6 = sld [smem:[#allocation0]]
  $region69: #{tpu_custom_call.1} parent=0
    _
  %s8 = ssub.s32 1, %s6
  %s9 = scalar_select 0, %s8, %s6
  $region1: #{tpu_custom_call.1} parent=0
    #allocation2 [shape = 'u8[8192]{0}', space=vmem, size = 0x2000, scoped, tag = 'input window, operand 0']
    #allocation3 [shape = 's32[2]{0}', space=sflag, size = 0x8, scoped, tag = 'scoped memory for tpu_custom_call.1']
    #allocation4 [shape = 's32[2]{0}', space=sflag, size = 0x8, scoped, tag = 'scoped memory for tpu_custom_call.1']
    #allocation5 [shape = 'u8[8192]{0}', space=vmem, size = 0x2000, scoped, tag = 'input window, operand 1']
    #allocation6 [shape = 's32[2]{0}', space=sflag, size = 0x8, scoped, tag = 'scoped memory for tpu_custom_call.1']
    #allocation7 [shape = 'u8[8192]{0}', space=vmem, size = 0x2000, scoped, tag = 'input window, operand 2']
    #allocation8 [shape = 'u8[49152]{0}', space=vmem, size = 0xc000, scoped, tag = 'input window, operand 3, single buffered']
    #allocation9 [shape = 's32[1]{0}', space=sflag, size = 0x4, scoped, tag = 'scoped memory for tpu_custom_call.1']
    #allocation10 [shape = 'u8[8192]{0}', space=vmem, size = 0x2000, scoped, tag = 'output window, operand 0']
    %10 = vsyncpa [#allocation3], 0
    %s11 = scalar_lea.sflag [#allocation3], 1
    %12 = vsyncpa %s11, 0
    %13 = vsyncpa [#allocation6], 0
    %s14 = scalar_lea.sflag [#allocation6], 1
    %15 = vsyncpa %s14, 0
    %16 = vsyncpa [#allocation9], 0
    %17 = vsyncpa [#allocation4], 0
    %s18 = scalar_lea.sflag [#allocation4], 1
    %19 = vsyncpa %s18, 0
    loop: start=0, step=1, limit=4
    $region2: #{tpu_custom_call.1} parent=1 // loop_pre_header
      _
    $region3: #{tpu_custom_call.1} parent=1 // loop_header
      %s21 = sphi 0, %s25
      %p22 = scmp.ge.s32.totalorder %s21, 4
      %s28 = sphi 0, %s40
      %s29 = sphi 0, %s36
      %s30 = sphi 0, %s28
      %s31 = sphi 0, %s29
      %s32 = sphi 0, %s30
      %s33 = sphi 0, %s31
      %s45 = sphi 0, %s47
      %s48 = sphi 0, %s45
      %s49 = sphi 0, %s48
      %s65 = sphi 0, %s49
      %s71 = sphi 0, %s73
      %s74 = sphi 0, %s71
      %s75 = sphi 0, %s74
      %s91 = sphi 0, %s75
      %s97 = sphi 0, %s99
      %s100 = sphi 0, %s97
      %s101 = sphi 0, %s100
      %s117 = sphi 0, %s101
      %s121 = sphi 0, %s121
      %s123 = sphi 0, %s121
      %s124 = sphi 0, %s123
      %s138 = sphi 0, %s124
      %s142 = sphi 0, %s142
      %s144 = sphi 0, %s142
      %s145 = sphi 0, %s144
      %s159 = sphi 0, %s145
      %s167 = sphi 0, %s169
      %s170 = sphi 0, %s167
      %s171 = sphi 0, %s170
      %s187 = sphi 0, %s171
    $region4: #{tpu_custom_call.1} parent=1 // loop_header_branch
      %24 = sbr.rel (%p22) target = $region8
    $region5: #{tpu_custom_call.1} parent=1 // loop_body
      %s26 = ssub.s32 %s21, 1
      %s27 = ssub.s32 %s21, 2
      %s34 = sadd.s32 1, %s29
      %p35 = scmp.ge.s32.totalorder %s34, 1
      %s36 = scalar_select %p35, 0, %s34
      %s37 = sadd.s32 1, %s28
      %s38 = scalar_select %p35, %s37, %s28
      %p39 = scmp.ge.s32.totalorder %s38, 2
      %s40 = scalar_select %p39, 0, %s38
      %s41 = ssub.s32 %s28, %s40
      %s42 = ssub.s32 %s29, %s36
      %s43 = sor.u32 %s41, %s42
      %p44 = scmp.eq.s32.totalorder %s43, 0
      %s46 = sadd.s32 %s45, 1
      %s47 = scalar_select %p44, %s45, %s46
      %p50 = pneg %p44
      %p51 = scmp.eq.s32.totalorder %s21, 1
      %p52 = por %p50, %p51
      %p53 = scmp.ne.s32.totalorder %s45, %s48
      %p54 = scmp.eq.s32.totalorder %s21, 0
      %p55 = por %p53, %p54
      %p56 = scmp.ne.s32.totalorder %s45, %s48
      %p57 = scmp.eq.s32.totalorder %s26, 1
      %p58 = por %p56, %p57
      %p59 = scmp.ne.s32.totalorder %s48, %s49
      %p60 = scmp.eq.s32.totalorder %s26, 0
      %p61 = por %p59, %p60
      %p62 = scmp.ne.s32.totalorder %s48, %s49
      %p63 = scmp.eq.s32.totalorder %s27, 1
      %p64 = por %p62, %p63
      %p66 = scmp.ne.s32.totalorder %s49, %s65
      %p67 = scmp.eq.s32.totalorder %s27, 0
      %p68 = por %p66, %p67
      %s69 = ssub.s32 %s28, %s40
      %p70 = scmp.eq.s32.totalorder %s69, 0
      %s72 = sadd.s32 %s71, 1
      %s73 = scalar_select %p70, %s71, %s72
      %p76 = pneg %p70
      %p77 = scmp.eq.s32.totalorder %s21, 1
      %p78 = por %p76, %p77
      %p79 = scmp.ne.s32.totalorder %s71, %s74
      %p80 = scmp.eq.s32.totalorder %s21, 0
      %p81 = por %p79, %p80
      %p82 = scmp.ne.s32.totalorder %s71, %s74
      %p83 = scmp.eq.s32.totalorder %s26, 1
      %p84 = por %p82, %p83
      %p85 = scmp.ne.s32.totalorder %s74, %s75
      %p86 = scmp.eq.s32.totalorder %s26, 0
      %p87 = por %p85, %p86
      %p88 = scmp.ne.s32.totalorder %s74, %s75
      %p89 = scmp.eq.s32.totalorder %s27, 1
      %p90 = por %p88, %p89
      %p92 = scmp.ne.s32.totalorder %s75, %s91
      %p93 = scmp.eq.s32.totalorder %s27, 0
      %p94 = por %p92, %p93
      %s95 = ssub.s32 %s28, %s40
      %p96 = scmp.eq.s32.totalorder %s95, 0
      %s98 = sadd.s32 %s97, 1
      %s99 = scalar_select %p96, %s97, %s98
      %p102 = pneg %p96
      %p103 = scmp.eq.s32.totalorder %s21, 1
      %p104 = por %p102, %p103
      %p105 = scmp.ne.s32.totalorder %s97, %s100
      %p106 = scmp.eq.s32.totalorder %s21, 0
      %p107 = por %p105, %p106
      %p108 = scmp.ne.s32.totalorder %s97, %s100
      %p109 = scmp.eq.s32.totalorder %s26, 1
      %p110 = por %p108, %p109
      %p111 = scmp.ne.s32.totalorder %s100, %s101
      %p112 = scmp.eq.s32.totalorder %s26, 0
      %p113 = por %p111, %p112
      %p114 = scmp.ne.s32.totalorder %s100, %s101
      %p115 = scmp.eq.s32.totalorder %s27, 1
      %p116 = por %p114, %p115
      %p118 = scmp.ne.s32.totalorder %s101, %s117
      %p119 = scmp.eq.s32.totalorder %s27, 0
      %p120 = por %p118, %p119
      %s122 = sadd.s32 %s121, 1
      %p125 = scmp.eq.s32.totalorder %s21, 1
      %p126 = scmp.ne.s32.totalorder %s121, %s123
      %p127 = scmp.eq.s32.totalorder %s21, 0
      %p128 = por %p126, %p127
      %p129 = scmp.ne.s32.totalorder %s121, %s123
      %p130 = scmp.eq.s32.totalorder %s26, 1
      %p131 = por %p129, %p130
      %p132 = scmp.ne.s32.totalorder %s123, %s124
      %p133 = scmp.eq.s32.totalorder %s26, 0
      %p134 = por %p132, %p133
      %p135 = scmp.ne.s32.totalorder %s123, %s124
      %p136 = scmp.eq.s32.totalorder %s27, 1
      %p137 = por %p135, %p136
      %p139 = scmp.ne.s32.totalorder %s124, %s138
      %p140 = scmp.eq.s32.totalorder %s27, 0
      %p141 = por %p139, %p140
      %s143 = sadd.s32 %s142, 1
      %p146 = scmp.eq.s32.totalorder %s21, 1
      %p147 = scmp.ne.s32.totalorder %s142, %s144
      %p148 = scmp.eq.s32.totalorder %s21, 0
      %p149 = por %p147, %p148
      %p150 = scmp.ne.s32.totalorder %s142, %s144
      %p151 = scmp.eq.s32.totalorder %s26, 1
      %p152 = por %p150, %p151
      %p153 = scmp.ne.s32.totalorder %s144, %s145
      %p154 = scmp.eq.s32.totalorder %s26, 0
      %p155 = por %p153, %p154
      %p156 = scmp.ne.s32.totalorder %s144, %s145
      %p157 = scmp.eq.s32.totalorder %s27, 1
      %p158 = por %p156, %p157
      %p160 = scmp.ne.s32.totalorder %s145, %s159
      %p161 = scmp.eq.s32.totalorder %s27, 0
      %p162 = por %p160, %p161
      %s163 = ssub.s32 %s28, %s40
      %s164 = ssub.s32 %s29, %s36
      %s165 = sor.u32 %s163, %s164
      %p166 = scmp.eq.s32.totalorder %s165, 0
      %s168 = sadd.s32 %s167, 1
      %s169 = scalar_select %p166, %s167, %s168
      %p172 = pneg %p166
      %p173 = scmp.eq.s32.totalorder %s21, 1
      %p174 = por %p172, %p173
      %p175 = scmp.ne.s32.totalorder %s167, %s170
      %p176 = scmp.eq.s32.totalorder %s21, 0
      %p177 = por %p175, %p176
      %p178 = scmp.ne.s32.totalorder %s167, %s170
      %p179 = scmp.eq.s32.totalorder %s26, 1
      %p180 = por %p178, %p179
      %p181 = scmp.ne.s32.totalorder %s170, %s171
      %p182 = scmp.eq.s32.totalorder %s26, 0
      %p183 = por %p181, %p182
      %p184 = scmp.ne.s32.totalorder %s170, %s171
      %p185 = scmp.eq.s32.totalorder %s27, 1
      %p186 = por %p184, %p185
      %p188 = scmp.ne.s32.totalorder %s171, %s187
      %p189 = scmp.eq.s32.totalorder %s27, 0
      %p190 = por %p188, %p189
      %p191 = scmp.le.s32.totalorder 1, %s21
      %p192 = scmp.lt.s32.totalorder %s21, 3
      %p193 = pnand %p191, %p192
      %p194 = pneg %p193
      // Predicated region
      $region9: #{tpu_custom_call.1} parent=5 // pred_check
        _
      $region10: #{tpu_custom_call.1} parent=5 // pred_check_branch
        %196 = sbr.rel (%p193) target = $region12
      $region11: #{tpu_custom_call.1} parent=5 // pred_region
        %s197 = ssub.s32 %s21, 1
        // Predicated region
        $region13: #{tpu_custom_call.1} parent=11 // pred_check
          %p198 = pneg %p134
        $region14: #{tpu_custom_call.1} parent=11 // pred_check_branch
          %200 = sbr.rel (%p198) target = $region16
        $region15: #{tpu_custom_call.1} parent=11 // pred_region
          %s202 = ssub.s32 1536, 1536
          %203 = vsyncadd [#allocation9], %s202
          %s204 = sshll.u32 [#allocation8], 4
          %s205 = int_to_ptr.vmem [resolvable:$true] %s204
          %210 = dma.hbm_to_vmem [thread:$0]  %s3, 1536, %s205, [#allocation9], 128, 128, 8
        $region16: #{tpu_custom_call.1} parent=11 // pred_fallthru
          _
        // Predicated region
        $region17: #{tpu_custom_call.1} parent=11 // pred_check
          %p211 = pneg %p155
        $region18: #{tpu_custom_call.1} parent=11 // pred_check_branch
          %213 = sbr.rel (%p211) target = $region20
        $region19: #{tpu_custom_call.1} parent=11 // pred_region
          _
        $region20: #{tpu_custom_call.1} parent=11 // pred_fallthru
          _
      $region12: #{tpu_custom_call.1} parent=5 // pred_fallthru
        _
      %p214 = scmp.lt.s32.totalorder %s21, 2
      // Predicated region
      $region21: #{tpu_custom_call.1} parent=5 // pred_check
        %p215 = pneg %p214
      $region22: #{tpu_custom_call.1} parent=5 // pred_check_branch
        %217 = sbr.rel (%p215) target = $region24
      $region23: #{tpu_custom_call.1} parent=5 // pred_region
        // Predicated region
        $region25: #{tpu_custom_call.1} parent=23 // pred_check
          %p218 = pneg %p55
        $region26: #{tpu_custom_call.1} parent=23 // pred_check_branch
          %220 = sbr.rel (%p218) target = $region28
        $region27: #{tpu_custom_call.1} parent=23 // pred_region
          %s221 = sand.u32 %s45, 1
          %s222 = scalar_lea.sflag [#allocation3], %s221
          %s223 = sand.u32 %s45, 1
          %s224 = smul.addr %s223, 8
          %s225 = scalar_lea.vmem [#allocation2], %s224
          %s227 = ssub.s32 128, 128
          %228 = vsyncadd %s222, %s227
          %s229 = sadd.s32 %s29, %s28
          %s230 = smul.addr %s229, 128
          %s231 = scalar_lea.hbm %s0, %s230
          %s233 = sshll.u32 %s225, 4
          %s234 = int_to_ptr.vmem [resolvable:$true] %s233
          %236 = dma.hbm_to_vmem [thread:$0]  %s231, 128, %s234, %s222
        $region28: #{tpu_custom_call.1} parent=23 // pred_fallthru
          _
        // Predicated region
        $region29: #{tpu_custom_call.1} parent=23 // pred_check
          %p237 = pneg %p81
        $region30: #{tpu_custom_call.1} parent=23 // pred_check_branch
          %239 = sbr.rel (%p237) target = $region32
        $region31: #{tpu_custom_call.1} parent=23 // pred_region
          %s240 = sand.u32 %s21, 1
          %s241 = scalar_lea.sflag [#allocation6], %s240
          %s242 = sand.u32 %s71, 1
          %s243 = smul.addr %s242, 8
          %s244 = scalar_lea.vmem [#allocation5], %s243
          %s246 = ssub.s32 128, 128
          %247 = vsyncadd %s241, %s246
          %s248 = smul.addr %s28, 128
          %s249 = scalar_lea.hbm %s1, %s248
          %s251 = sshll.u32 %s244, 4
          %s252 = int_to_ptr.vmem [resolvable:$true] %s251
          %254 = dma.hbm_to_vmem [thread:$0]  %s249, 128, %s252, %s241
        $region32: #{tpu_custom_call.1} parent=23 // pred_fallthru
          _
        // Predicated region
        $region33: #{tpu_custom_call.1} parent=23 // pred_check
          %p255 = pneg %p107
        $region34: #{tpu_custom_call.1} parent=23 // pred_check_branch
          %257 = sbr.rel (%p255) target = $region36
        $region35: #{tpu_custom_call.1} parent=23 // pred_region
          %s258 = sand.u32 %s21, 1
          %s259 = scalar_lea.sflag [#allocation6], %s258
          %s260 = sand.u32 %s97, 1
          %s261 = smul.addr %s260, 8
          %s262 = scalar_lea.vmem [#allocation7], %s261
          %s264 = ssub.s32 128, 128
          %265 = vsyncadd %s259, %s264
          %s266 = smul.addr %s28, 128
          %s267 = scalar_lea.hbm %s2, %s266
          %s269 = sshll.u32 %s262, 4
          %s270 = int_to_ptr.vmem [resolvable:$true] %s269
          %272 = dma.hbm_to_vmem [thread:$0]  %s267, 128, %s270, %s259
        $region36: #{tpu_custom_call.1} parent=23 // pred_fallthru
          _
      $region24: #{tpu_custom_call.1} parent=5 // pred_fallthru
        _
      %p273 = scmp.le.s32.totalorder 1, %s21
      %p274 = scmp.lt.s32.totalorder %s21, 3
      %p275 = pnand %p273, %p274
      %p276 = pneg %p275
      // Predicated region
      $region37: #{tpu_custom_call.1} parent=5 // pred_check
        _
      $region38: #{tpu_custom_call.1} parent=5 // pred_check_branch
        %278 = sbr.rel (%p275) target = $region40
      $region39: #{tpu_custom_call.1} parent=5 // pred_region
        %s279 = ssub.s32 %s21, 1
        %s280 = sand.u32 %s48, 1
        %s281 = scalar_lea.sflag [#allocation3], %s280
        %s282 = sand.u32 %s48, 1
        %s283 = smul.addr %s282, 8
        %s284 = scalar_lea.vmem [#allocation2], %s283
        // Predicated region
        $region41: #{tpu_custom_call.1} parent=39 // pred_check
          %p285 = pneg %p61
        $region42: #{tpu_custom_call.1} parent=39 // pred_check_branch
          %287 = sbr.rel (%p285) target = $region44
        $region43: #{tpu_custom_call.1} parent=39 // pred_region
          %288 = dma.done %s281, 128
        $region44: #{tpu_custom_call.1} parent=39 // pred_fallthru
          _
        %s289 = sand.u32 %s26, 1
        %s290 = scalar_lea.sflag [#allocation6], %s289
        %s291 = sand.u32 %s74, 1
        %s292 = smul.addr %s291, 8
        %s293 = scalar_lea.vmem [#allocation5], %s292
        // Predicated region
        $region45: #{tpu_custom_call.1} parent=39 // pred_check
          %p294 = pneg %p87
        $region46: #{tpu_custom_call.1} parent=39 // pred_check_branch
          %296 = sbr.rel (%p294) target = $region48
        $region47: #{tpu_custom_call.1} parent=39 // pred_region
          %297 = dma.done %s290, 128
        $region48: #{tpu_custom_call.1} parent=39 // pred_fallthru
          _
        %s298 = sand.u32 %s26, 1
        %s299 = scalar_lea.sflag [#allocation6], %s298
        %s300 = sand.u32 %s100, 1
        %s301 = smul.addr %s300, 8
        %s302 = scalar_lea.vmem [#allocation7], %s301
        // Predicated region
        $region49: #{tpu_custom_call.1} parent=39 // pred_check
          %p303 = pneg %p113
        $region50: #{tpu_custom_call.1} parent=39 // pred_check_branch
          %305 = sbr.rel (%p303) target = $region52
        $region51: #{tpu_custom_call.1} parent=39 // pred_region
          %306 = dma.done %s299, 128
        $region52: #{tpu_custom_call.1} parent=39 // pred_fallthru
          _
        // Predicated region
        $region53: #{tpu_custom_call.1} parent=39 // pred_check
          %p307 = pneg %p134
        $region54: #{tpu_custom_call.1} parent=39 // pred_check_branch
          %309 = sbr.rel (%p307) target = $region56
        $region55: #{tpu_custom_call.1} parent=39 // pred_region
          %310 = dma.done [#allocation9], 1536
        $region56: #{tpu_custom_call.1} parent=39 // pred_fallthru
          _
        %s311 = sand.u32 %s48, 1
        %s312 = scalar_lea.sflag [#allocation3], %s311
        %s313 = sand.u32 %s48, 1
        %s314 = smul.addr %s313, 8
        %s315 = scalar_lea.vmem [#allocation2], %s314
        %p316 = pneg %p61
        %p317 = pneg %p58
        %s318 = sand.u32 %s26, 1
        %s319 = scalar_lea.sflag [#allocation6], %s318
        %s320 = sand.u32 %s74, 1
        %s321 = smul.addr %s320, 8
        %s322 = scalar_lea.vmem [#allocation5], %s321
        %p323 = pneg %p87
        %p324 = pneg %p84
        %s325 = sand.u32 %s26, 1
        %s326 = scalar_lea.sflag [#allocation6], %s325
        %s327 = sand.u32 %s100, 1
        %s328 = smul.addr %s327, 8
        %s329 = scalar_lea.vmem [#allocation7], %s328
        %p330 = pneg %p113
        %p331 = pneg %p110
        %p332 = pneg %p134
        %p333 = pneg %p131
        %p334 = pneg %p155
        %p335 = pneg %p152
        %p336 = pneg %p183
        %p337 = pneg %p180
        %s338 = sand.u32 %s170, 1
        %s339 = scalar_lea.sflag [#allocation4], %s338
        %s340 = sand.u32 %s170, 1
        %s341 = smul.addr %s340, 8
        %s342 = scalar_lea.vmem [#allocation10], %s341
        %v343 = vld [vmem:[%s284] sm:$0xff]
        %v344 = vld [vmem:[#allocation8] sm:$0xff]
        %v345 = vld [vmem:[#allocation8 + $0x8] sm:$0xff]
        %v346 = vld [vmem:[#allocation8 + $0x10] sm:$0xff]
        %v347 = vld [vmem:[#allocation8 + $0x18] sm:$0xff]
        %v348 = vld [vmem:[%s4] sm:$0x1]
        %v350 = vlaneseq
        %v351 = vshrl.u32 %v350, 7
        %v352 = vsub.s32 0, %v351
        %v353 = vrot.slane %v348, %v352
        %vm355 = vcmask 261120
        %v357 = vsel %vm355, %v343, 0
        %359 = vmatprep.subr.mxu0 0.0
        %360 = vmatpush1.msra.mxu0 0.0
        %361 = vmatprep.subr.mxu0 0.0
        %362 = vmatpush1.msra.mxu0 0.0
        %363 = vmatprep.subr.mxu0 0.0
        %364 = vmatpush1.msra.mxu0 0.0
        %365 = vmatprep.subr.mxu0 0.0
        %366 = vmatpush1.msra.mxu0 0.0
        %367 = vmatprep.subr.mxu0 0.0
        %368 = vmatpush1.msra.mxu0 0.0
        %369 = vmatprep.subr.mxu0 0.0
        %370 = vmatpush1.msra.mxu0 0.0
        %371 = vmatprep.subr.mxu0 0.0
        %372 = vmatpush1.msra.mxu0 0.0
        %373 = vmatprep.subr.mxu0 0.0
        %374 = vmatpush1.msra.mxu0 0.0
        %375 = vmatprep.subr.mxu0 0.0
        %376 = vmatpush1.msra.mxu0 0.0
        %377 = vmatprep.subr.mxu0 0.0
        %378 = vmatpush1.msra.mxu0 0.0
        %379 = vmatprep.subr.mxu0 0.0
        %380 = vmatpush1.msra.mxu0 0.0
        %381 = vmatprep.subr.mxu0 0.0
        %382 = vmatpush1.msra.mxu0 0.0
        %383 = vmatprep.subr.mxu0 0.0
        %384 = vmatpush1.msra.mxu0 %v347
        %385 = vmatprep.subr.mxu0 0.0
        %386 = vmatpush1.msra.mxu0 %v346
        %387 = vmatprep.subr.mxu0 0.0
        %388 = vmatpush1.msra.mxu0 %v345
        %389 = vmatprep.subr.mxu0 0.0
        %390 = vmatpush1.msra.mxu0 %v344
        %391 = vmatprep.subr.mxu0 0.0
        %392 = vmatpush2.msra.mxu0 0.0
        %393 = vmatprep.subr.mxu0 0.0
        %394 = vmatpush2.msra.mxu0 0.0
        %395 = vmatprep.subr.mxu0 0.0
        %396 = vmatpush2.msra.mxu0 0.0
        %397 = vmatprep.subr.mxu0 0.0
        %398 = vmatpush2.msra.mxu0 0.0
        %399 = vmatprep.subr.mxu0 0.0
        %400 = vmatpush2.msra.mxu0 0.0
        %401 = vmatprep.subr.mxu0 0.0
        %402 = vmatpush2.msra.mxu0 0.0
        %403 = vmatprep.subr.mxu0 0.0
        %404 = vmatpush2.msra.mxu0 0.0
        %405 = vmatprep.subr.mxu0 0.0
        %406 = vmatpush2.msra.mxu0 0.0
        %407 = vmatprep.subr.mxu0 0.0
        %408 = vmatpush2.msra.mxu0 0.0
        %409 = vmatprep.subr.mxu0 0.0
        %410 = vmatpush2.msra.mxu0 0.0
        %411 = vmatprep.subr.mxu0 0.0
        %412 = vmatpush2.msra.mxu0 0.0
        %413 = vmatprep.subr.mxu0 0.0
        %414 = vmatpush2.msra.mxu0 0.0
        %415 = vmatprep.subr.mxu0 0.0
        %416 = vmatpush2.msra.mxu0 0.0
        %417 = vmatprep.subr.mxu0 0.0
        %418 = vmatpush2.msra.mxu0 0.0
        %419 = vmatprep.subr.mxu0 0.0
        %420 = vmatpush2.msra.mxu0 0.0
        %421 = vmatprep.subr.mxu0 0.0
        %422 = vmatpush2.msra.mxu0 0.0
        %423 = vmatprep.mubr.f32.mxu0 0.0
        %424 = vmatmul.mubr.f32.gmra.mxu0 %v357
        %v425 = vpop.f32.mrf.mxu0
        %v426 = vadd.f32 %v353, %v425
        %v427 = vpop.f32.mrf.mxu0
        %428 = vdwg.mxu0
        %v429 = vld [vmem:[%s293] sm:$0xff]
        %s430 = scalar_lea.vmem [#allocation8], 32
        %v431 = vld [vmem:[%s430] sm:$0xff]
        %v432 = vld [vmem:[%s430 + $0x8] sm:$0xff]
        %v433 = vld [vmem:[%s430 + $0x10] sm:$0xff]
        %v434 = vld [vmem:[%s430 + $0x18] sm:$0xff]
        %s435 = scalar_lea.vmem %s4, 1
        %v436 = vld [vmem:[%s435] sm:$0x1]
        %v438 = vlaneseq
        %v439 = vshrl.u32 %v438, 7
        %v440 = vsub.s32 0, %v439
        %v441 = vrot.slane %v436, %v440
        %v444 = vsel %vm355, %v429, 0
        %446 = vmatprep.subr.mxu0 0.0
        %447 = vmatpush1.msra.mxu0 0.0
        %448 = vmatprep.subr.mxu0 0.0
        %449 = vmatpush1.msra.mxu0 0.0
        %450 = vmatprep.subr.mxu0 0.0
        %451 = vmatpush1.msra.mxu0 0.0
        %452 = vmatprep.subr.mxu0 0.0
        %453 = vmatpush1.msra.mxu0 0.0
        %454 = vmatprep.subr.mxu0 0.0
        %455 = vmatpush1.msra.mxu0 0.0
        %456 = vmatprep.subr.mxu0 0.0
        %457 = vmatpush1.msra.mxu0 0.0
        %458 = vmatprep.subr.mxu0 0.0
        %459 = vmatpush1.msra.mxu0 0.0
        %460 = vmatprep.subr.mxu0 0.0
        %461 = vmatpush1.msra.mxu0 0.0
        %462 = vmatprep.subr.mxu0 0.0
        %463 = vmatpush1.msra.mxu0 0.0
        %464 = vmatprep.subr.mxu0 0.0
        %465 = vmatpush1.msra.mxu0 0.0
        %466 = vmatprep.subr.mxu0 0.0
        %467 = vmatpush1.msra.mxu0 0.0
        %468 = vmatprep.subr.mxu0 0.0
        %469 = vmatpush1.msra.mxu0 0.0
        %470 = vmatprep.subr.mxu0 0.0
        %471 = vmatpush1.msra.mxu0 %v434
        %472 = vmatprep.subr.mxu0 0.0
        %473 = vmatpush1.msra.mxu0 %v433
        %474 = vmatprep.subr.mxu0 0.0
        %475 = vmatpush1.msra.mxu0 %v432
        %476 = vmatprep.subr.mxu0 0.0
        %477 = vmatpush1.msra.mxu0 %v431
        %478 = vmatprep.subr.mxu0 0.0
        %479 = vmatpush2.msra.mxu0 0.0
        %480 = vmatprep.subr.mxu0 0.0
        %481 = vmatpush2.msra.mxu0 0.0
        %482 = vmatprep.subr.mxu0 0.0
        %483 = vmatpush2.msra.mxu0 0.0
        %484 = vmatprep.subr.mxu0 0.0
        %485 = vmatpush2.msra.mxu0 0.0
        %486 = vmatprep.subr.mxu0 0.0
        %487 = vmatpush2.msra.mxu0 0.0
        %488 = vmatprep.subr.mxu0 0.0
        %489 = vmatpush2.msra.mxu0 0.0
        %490 = vmatprep.subr.mxu0 0.0
        %491 = vmatpush2.msra.mxu0 0.0
        %492 = vmatprep.subr.mxu0 0.0
        %493 = vmatpush2.msra.mxu0 0.0
        %494 = vmatprep.subr.mxu0 0.0
        %495 = vmatpush2.msra.mxu0 0.0
        %496 = vmatprep.subr.mxu0 0.0
        %497 = vmatpush2.msra.mxu0 0.0
        %498 = vmatprep.subr.mxu0 0.0
        %499 = vmatpush2.msra.mxu0 0.0
        %500 = vmatprep.subr.mxu0 0.0
        %501 = vmatpush2.msra.mxu0 0.0
        %502 = vmatprep.subr.mxu0 0.0
        %503 = vmatpush2.msra.mxu0 0.0
        %504 = vmatprep.subr.mxu0 0.0
        %505 = vmatpush2.msra.mxu0 0.0
        %506 = vmatprep.subr.mxu0 0.0
        %507 = vmatpush2.msra.mxu0 0.0
        %508 = vmatprep.subr.mxu0 0.0
        %509 = vmatpush2.msra.mxu0 0.0
        %510 = vmatprep.mubr.f32.mxu0 0.0
        %511 = vmatmul.mubr.f32.gmra.mxu0 %v444
        %v512 = vpop.f32.mrf.mxu0
        %v513 = vadd.f32 %v441, %v512
        %v514 = vpop.f32.mrf.mxu0
        %515 = vdwg.mxu0
        %v516 = vld [vmem:[%s302] sm:$0xff]
        %s517 = scalar_lea.vmem [#allocation8], 64
        %v518 = vld [vmem:[%s517] sm:$0xff]
        %v519 = vld [vmem:[%s517 + $0x8] sm:$0xff]
        %v520 = vld [vmem:[%s517 + $0x10] sm:$0xff]
        %v521 = vld [vmem:[%s517 + $0x18] sm:$0xff]
        %s522 = scalar_lea.vmem %s4, 2
        %v523 = vld [vmem:[%s522] sm:$0x1]
        %v525 = vlaneseq
        %v526 = vshrl.u32 %v525, 7
        %v527 = vsub.s32 0, %v526
        %v528 = vrot.slane %v523, %v527
        %v531 = vsel %vm355, %v516, 0
        %533 = vmatprep.subr.mxu0 0.0
        %534 = vmatpush1.msra.mxu0 0.0
        %535 = vmatprep.subr.mxu0 0.0
        %536 = vmatpush1.msra.mxu0 0.0
        %537 = vmatprep.subr.mxu0 0.0
        %538 = vmatpush1.msra.mxu0 0.0
        %539 = vmatprep.subr.mxu0 0.0
        %540 = vmatpush1.msra.mxu0 0.0
        %541 = vmatprep.subr.mxu0 0.0
        %542 = vmatpush1.msra.mxu0 0.0
        %543 = vmatprep.subr.mxu0 0.0
        %544 = vmatpush1.msra.mxu0 0.0
        %545 = vmatprep.subr.mxu0 0.0
        %546 = vmatpush1.msra.mxu0 0.0
        %547 = vmatprep.subr.mxu0 0.0
        %548 = vmatpush1.msra.mxu0 0.0
        %549 = vmatprep.subr.mxu0 0.0
        %550 = vmatpush1.msra.mxu0 0.0
        %551 = vmatprep.subr.mxu0 0.0
        %552 = vmatpush1.msra.mxu0 0.0
        %553 = vmatprep.subr.mxu0 0.0
        %554 = vmatpush1.msra.mxu0 0.0
        %555 = vmatprep.subr.mxu0 0.0
        %556 = vmatpush1.msra.mxu0 0.0
        %557 = vmatprep.subr.mxu0 0.0
        %558 = vmatpush1.msra.mxu0 %v521
        %559 = vmatprep.subr.mxu0 0.0
        %560 = vmatpush1.msra.mxu0 %v520
        %561 = vmatprep.subr.mxu0 0.0
        %562 = vmatpush1.msra.mxu0 %v519
        %563 = vmatprep.subr.mxu0 0.0
        %564 = vmatpush1.msra.mxu0 %v518
        %565 = vmatprep.subr.mxu0 0.0
        %566 = vmatpush2.msra.mxu0 0.0
        %567 = vmatprep.subr.mxu0 0.0
        %568 = vmatpush2.msra.mxu0 0.0
        %569 = vmatprep.subr.mxu0 0.0
        %570 = vmatpush2.msra.mxu0 0.0
        %571 = vmatprep.subr.mxu0 0.0
        %572 = vmatpush2.msra.mxu0 0.0
        %573 = vmatprep.subr.mxu0 0.0
        %574 = vmatpush2.msra.mxu0 0.0
        %575 = vmatprep.subr.mxu0 0.0
        %576 = vmatpush2.msra.mxu0 0.0
        %577 = vmatprep.subr.mxu0 0.0
        %578 = vmatpush2.msra.mxu0 0.0
        %579 = vmatprep.subr.mxu0 0.0
        %580 = vmatpush2.msra.mxu0 0.0
        %581 = vmatprep.subr.mxu0 0.0
        %582 = vmatpush2.msra.mxu0 0.0
        %583 = vmatprep.subr.mxu0 0.0
        %584 = vmatpush2.msra.mxu0 0.0
        %585 = vmatprep.subr.mxu0 0.0
        %586 = vmatpush2.msra.mxu0 0.0
        %587 = vmatprep.subr.mxu0 0.0
        %588 = vmatpush2.msra.mxu0 0.0
        %589 = vmatprep.subr.mxu0 0.0
        %590 = vmatpush2.msra.mxu0 0.0
        %591 = vmatprep.subr.mxu0 0.0
        %592 = vmatpush2.msra.mxu0 0.0
        %593 = vmatprep.subr.mxu0 0.0
        %594 = vmatpush2.msra.mxu0 0.0
        %595 = vmatprep.subr.mxu0 0.0
        %596 = vmatpush2.msra.mxu0 0.0
        %597 = vmatprep.mubr.f32.mxu0 0.0
        %598 = vmatmul.mubr.f32.gmra.mxu0 %v531
        %v599 = vpop.f32.mrf.mxu0
        %v600 = vadd.f32 %v528, %v599
        %v601 = vpop.f32.mrf.mxu0
        %602 = vdwg.mxu0
        %v603 = vmul.f32 %v426, 0.35355338
        %605 = vrot.lane.b32.xlu0 %v603, 120
        %v606 = vpop.permute.xlu0 %605
        %607 = vrot.lane.b32.xlu0 %v603, 112
        %v608 = vpop.permute.xlu0 %607
        %609 = vrot.lane.b32.xlu0 %v603, 104
        %v610 = vpop.permute.xlu0 %609
        %612 = vrot.lane.b32.xlu0 %v513, 120
        %v613 = vpop.permute.xlu0 %612
        %614 = vrot.lane.b32.xlu0 %v513, 112
        %v615 = vpop.permute.xlu0 %614
        %616 = vrot.lane.b32.xlu0 %v513, 104
        %v617 = vpop.permute.xlu0 %616
        %619 = vrot.lane.b32.xlu0 %v600, 120
        %v620 = vpop.permute.xlu0 %619
        %622 = vrot.lane.b32.xlu0 %v600, 112
        %v623 = vpop.permute.xlu0 %622
        %625 = vrot.lane.b32.xlu0 %v600, 104
        %v626 = vpop.permute.xlu0 %625
        %vm628 = vcmask 64512
        %v629 = vsel %vm628, %v603, 0
        %v631 = vsel %vm628, %v513, 0
        %633 = vmatprep.subr.mxu0 0.0
        %634 = vmatpush1.xpose.msra.mxu0 0.0
        %635 = vmatprep.subr.mxu0 0.0
        %636 = vmatpush1.xpose.msra.mxu0 0.0
        %637 = vmatprep.subr.mxu0 0.0
        %638 = vmatpush1.xpose.msra.mxu0 0.0
        %639 = vmatprep.subr.mxu0 0.0
        %640 = vmatpush1.xpose.msra.mxu0 0.0
        %641 = vmatprep.subr.mxu0 0.0
        %642 = vmatpush1.xpose.msra.mxu0 0.0
        %643 = vmatprep.subr.mxu0 0.0
        %644 = vmatpush1.xpose.msra.mxu0 0.0
        %645 = vmatprep.subr.mxu0 0.0
        %646 = vmatpush1.xpose.msra.mxu0 0.0
        %647 = vmatprep.subr.mxu0 0.0
        %648 = vmatpush1.xpose.msra.mxu0 0.0
        %649 = vmatprep.subr.mxu0 0.0
        %650 = vmatpush1.xpose.msra.mxu0 0.0
        %651 = vmatprep.subr.mxu0 0.0
        %652 = vmatpush1.xpose.msra.mxu0 0.0
        %653 = vmatprep.subr.mxu0 0.0
        %654 = vmatpush1.xpose.msra.mxu0 0.0
        %655 = vmatprep.subr.mxu0 0.0
        %656 = vmatpush1.xpose.msra.mxu0 0.0
        %657 = vmatprep.subr.mxu0 0.0
        %658 = vmatpush1.xpose.msra.mxu0 0.0
        %659 = vmatprep.subr.mxu0 0.0
        %660 = vmatpush1.xpose.msra.mxu0 0.0
        %661 = vmatprep.subr.mxu0 0.0
        %662 = vmatpush1.xpose.msra.mxu0 0.0
        %663 = vmatprep.subr.mxu0 0.0
        %664 = vmatpush1.xpose.msra.mxu0 %v631
        %665 = vmatprep.subr.mxu0 0.0
        %666 = vmatpush2.xpose.msra.mxu0 0.0
        %667 = vmatprep.subr.mxu0 0.0
        %668 = vmatpush2.xpose.msra.mxu0 0.0
        %669 = vmatprep.subr.mxu0 0.0
        %670 = vmatpush2.xpose.msra.mxu0 0.0
        %671 = vmatprep.subr.mxu0 0.0
        %672 = vmatpush2.xpose.msra.mxu0 0.0
        %673 = vmatprep.subr.mxu0 0.0
        %674 = vmatpush2.xpose.msra.mxu0 0.0
        %675 = vmatprep.subr.mxu0 0.0
        %676 = vmatpush2.xpose.msra.mxu0 0.0
        %677 = vmatprep.subr.mxu0 0.0
        %678 = vmatpush2.xpose.msra.mxu0 0.0
        %679 = vmatprep.subr.mxu0 0.0
        %680 = vmatpush2.xpose.msra.mxu0 0.0
        %681 = vmatprep.subr.mxu0 0.0
        %682 = vmatpush2.xpose.msra.mxu0 0.0
        %683 = vmatprep.subr.mxu0 0.0
        %684 = vmatpush2.xpose.msra.mxu0 0.0
        %685 = vmatprep.subr.mxu0 0.0
        %686 = vmatpush2.xpose.msra.mxu0 0.0
        %687 = vmatprep.subr.mxu0 0.0
        %688 = vmatpush2.xpose.msra.mxu0 0.0
        %689 = vmatprep.subr.mxu0 0.0
        %690 = vmatpush2.xpose.msra.mxu0 0.0
        %691 = vmatprep.subr.mxu0 0.0
        %692 = vmatpush2.xpose.msra.mxu0 0.0
        %693 = vmatprep.subr.mxu0 0.0
        %694 = vmatpush2.xpose.msra.mxu0 0.0
        %695 = vmatprep.subr.mxu0 0.0
        %696 = vmatpush2.xpose.msra.mxu0 0.0
        %697 = vmatprep.mubr.f32.mxu0 0.0
        %698 = vmatmul.mubr.f32.gmra.mxu0 %v629
        %v699 = vpop.f32.mrf.mxu0
        %v700 = vadd.f32 0.0, %v699
        %v701 = vpop.f32.mrf.mxu0
        %702 = vdwg.mxu0
        %v703 = vsel %vm628, %v606, 0
        %v705 = vsel %vm628, %v613, 0
        %707 = vmatprep.subr.mxu0 0.0
        %708 = vmatpush1.xpose.msra.mxu0 0.0
        %709 = vmatprep.subr.mxu0 0.0
        %710 = vmatpush1.xpose.msra.mxu0 0.0
        %711 = vmatprep.subr.mxu0 0.0
        %712 = vmatpush1.xpose.msra.mxu0 0.0
        %713 = vmatprep.subr.mxu0 0.0
        %714 = vmatpush1.xpose.msra.mxu0 0.0
        %715 = vmatprep.subr.mxu0 0.0
        %716 = vmatpush1.xpose.msra.mxu0 0.0
        %717 = vmatprep.subr.mxu0 0.0
        %718 = vmatpush1.xpose.msra.mxu0 0.0
        %719 = vmatprep.subr.mxu0 0.0
        %720 = vmatpush1.xpose.msra.mxu0 0.0
        %721 = vmatprep.subr.mxu0 0.0
        %722 = vmatpush1.xpose.msra.mxu0 0.0
        %723 = vmatprep.subr.mxu0 0.0
        %724 = vmatpush1.xpose.msra.mxu0 0.0
        %725 = vmatprep.subr.mxu0 0.0
        %726 = vmatpush1.xpose.msra.mxu0 0.0
        %727 = vmatprep.subr.mxu0 0.0
        %728 = vmatpush1.xpose.msra.mxu0 0.0
        %729 = vmatprep.subr.mxu0 0.0
        %730 = vmatpush1.xpose.msra.mxu0 0.0
        %731 = vmatprep.subr.mxu0 0.0
        %732 = vmatpush1.xpose.msra.mxu0 0.0
        %733 = vmatprep.subr.mxu0 0.0
        %734 = vmatpush1.xpose.msra.mxu0 0.0
        %735 = vmatprep.subr.mxu0 0.0
        %736 = vmatpush1.xpose.msra.mxu0 0.0
        %737 = vmatprep.subr.mxu0 0.0
        %738 = vmatpush1.xpose.msra.mxu0 %v705
        %739 = vmatprep.subr.mxu0 0.0
        %740 = vmatpush2.xpose.msra.mxu0 0.0
        %741 = vmatprep.subr.mxu0 0.0
        %742 = vmatpush2.xpose.msra.mxu0 0.0
        %743 = vmatprep.subr.mxu0 0.0
        %744 = vmatpush2.xpose.msra.mxu0 0.0
        %745 = vmatprep.subr.mxu0 0.0
        %746 = vmatpush2.xpose.msra.mxu0 0.0
        %747 = vmatprep.subr.mxu0 0.0
        %748 = vmatpush2.xpose.msra.mxu0 0.0
        %749 = vmatprep.subr.mxu0 0.0
        %750 = vmatpush2.xpose.msra.mxu0 0.0
        %751 = vmatprep.subr.mxu0 0.0
        %752 = vmatpush2.xpose.msra.mxu0 0.0
        %753 = vmatprep.subr.mxu0 0.0
        %754 = vmatpush2.xpose.msra.mxu0 0.0
        %755 = vmatprep.subr.mxu0 0.0
        %756 = vmatpush2.xpose.msra.mxu0 0.0
        %757 = vmatprep.subr.mxu0 0.0
        %758 = vmatpush2.xpose.msra.mxu0 0.0
        %759 = vmatprep.subr.mxu0 0.0
        %760 = vmatpush2.xpose.msra.mxu0 0.0
        %761 = vmatprep.subr.mxu0 0.0
        %762 = vmatpush2.xpose.msra.mxu0 0.0
        %763 = vmatprep.subr.mxu0 0.0
        %764 = vmatpush2.xpose.msra.mxu0 0.0
        %765 = vmatprep.subr.mxu0 0.0
        %766 = vmatpush2.xpose.msra.mxu0 0.0
        %767 = vmatprep.subr.mxu0 0.0
        %768 = vmatpush2.xpose.msra.mxu0 0.0
        %769 = vmatprep.subr.mxu0 0.0
        %770 = vmatpush2.xpose.msra.mxu0 0.0
        %771 = vmatprep.mubr.f32.mxu0 0.0
        %772 = vmatmul.mubr.f32.gmra.mxu0 %v703
        %v773 = vpop.f32.mrf.mxu0
        %v774 = vadd.f32 0.0, %v773
        %v775 = vpop.f32.mrf.mxu0
        %776 = vdwg.mxu0
        %v777 = vsel %vm628, %v608, 0
        %v779 = vsel %vm628, %v615, 0
        %781 = vmatprep.subr.mxu0 0.0
        %782 = vmatpush1.xpose.msra.mxu0 0.0
        %783 = vmatprep.subr.mxu0 0.0
        %784 = vmatpush1.xpose.msra.mxu0 0.0
        %785 = vmatprep.subr.mxu0 0.0
        %786 = vmatpush1.xpose.msra.mxu0 0.0
        %787 = vmatprep.subr.mxu0 0.0
        %788 = vmatpush1.xpose.msra.mxu0 0.0
        %789 = vmatprep.subr.mxu0 0.0
        %790 = vmatpush1.xpose.msra.mxu0 0.0
        %791 = vmatprep.subr.mxu0 0.0
        %792 = vmatpush1.xpose.msra.mxu0 0.0
        %793 = vmatprep.subr.mxu0 0.0
        %794 = vmatpush1.xpose.msra.mxu0 0.0
        %795 = vmatprep.subr.mxu0 0.0
        %796 = vmatpush1.xpose.msra.mxu0 0.0
        %797 = vmatprep.subr.mxu0 0.0
        %798 = vmatpush1.xpose.msra.mxu0 0.0
        %799 = vmatprep.subr.mxu0 0.0
        %800 = vmatpush1.xpose.msra.mxu0 0.0
        %801 = vmatprep.subr.mxu0 0.0
        %802 = vmatpush1.xpose.msra.mxu0 0.0
        %803 = vmatprep.subr.mxu0 0.0
        %804 = vmatpush1.xpose.msra.mxu0 0.0
        %805 = vmatprep.subr.mxu0 0.0
        %806 = vmatpush1.xpose.msra.mxu0 0.0
        %807 = vmatprep.subr.mxu0 0.0
        %808 = vmatpush1.xpose.msra.mxu0 0.0
        %809 = vmatprep.subr.mxu0 0.0
        %810 = vmatpush1.xpose.msra.mxu0 0.0
        %811 = vmatprep.subr.mxu0 0.0
        %812 = vmatpush1.xpose.msra.mxu0 %v779
        %813 = vmatprep.subr.mxu0 0.0
        %814 = vmatpush2.xpose.msra.mxu0 0.0
        %815 = vmatprep.subr.mxu0 0.0
        %816 = vmatpush2.xpose.msra.mxu0 0.0
        %817 = vmatprep.subr.mxu0 0.0
        %818 = vmatpush2.xpose.msra.mxu0 0.0
        %819 = vmatprep.subr.mxu0 0.0
        %820 = vmatpush2.xpose.msra.mxu0 0.0
        %821 = vmatprep.subr.mxu0 0.0
        %822 = vmatpush2.xpose.msra.mxu0 0.0
        %823 = vmatprep.subr.mxu0 0.0
        %824 = vmatpush2.xpose.msra.mxu0 0.0
        %825 = vmatprep.subr.mxu0 0.0
        %826 = vmatpush2.xpose.msra.mxu0 0.0
        %827 = vmatprep.subr.mxu0 0.0
        %828 = vmatpush2.xpose.msra.mxu0 0.0
        %829 = vmatprep.subr.mxu0 0.0
        %830 = vmatpush2.xpose.msra.mxu0 0.0
        %831 = vmatprep.subr.mxu0 0.0
        %832 = vmatpush2.xpose.msra.mxu0 0.0
        %833 = vmatprep.subr.mxu0 0.0
        %834 = vmatpush2.xpose.msra.mxu0 0.0
        %835 = vmatprep.subr.mxu0 0.0
        %836 = vmatpush2.xpose.msra.mxu0 0.0
        %837 = vmatprep.subr.mxu0 0.0
        %838 = vmatpush2.xpose.msra.mxu0 0.0
        %839 = vmatprep.subr.mxu0 0.0
        %840 = vmatpush2.xpose.msra.mxu0 0.0
        %841 = vmatprep.subr.mxu0 0.0
        %842 = vmatpush2.xpose.msra.mxu0 0.0
        %843 = vmatprep.subr.mxu0 0.0
        %844 = vmatpush2.xpose.msra.mxu0 0.0
        %845 = vmatprep.mubr.f32.mxu0 0.0
        %846 = vmatmul.mubr.f32.gmra.mxu0 %v777
        %v847 = vpop.f32.mrf.mxu0
        %v848 = vadd.f32 0.0, %v847
        %v849 = vpop.f32.mrf.mxu0
        %850 = vdwg.mxu0
        %v851 = vsel %vm628, %v610, 0
        %v853 = vsel %vm628, %v617, 0
        %855 = vmatprep.subr.mxu0 0.0
        %856 = vmatpush1.xpose.msra.mxu0 0.0
        %857 = vmatprep.subr.mxu0 0.0
        %858 = vmatpush1.xpose.msra.mxu0 0.0
        %859 = vmatprep.subr.mxu0 0.0
        %860 = vmatpush1.xpose.msra.mxu0 0.0
        %861 = vmatprep.subr.mxu0 0.0
        %862 = vmatpush1.xpose.msra.mxu0 0.0
        %863 = vmatprep.subr.mxu0 0.0
        %864 = vmatpush1.xpose.msra.mxu0 0.0
        %865 = vmatprep.subr.mxu0 0.0
        %866 = vmatpush1.xpose.msra.mxu0 0.0
        %867 = vmatprep.subr.mxu0 0.0
        %868 = vmatpush1.xpose.msra.mxu0 0.0
        %869 = vmatprep.subr.mxu0 0.0
        %870 = vmatpush1.xpose.msra.mxu0 0.0
        %871 = vmatprep.subr.mxu0 0.0
        %872 = vmatpush1.xpose.msra.mxu0 0.0
        %873 = vmatprep.subr.mxu0 0.0
        %874 = vmatpush1.xpose.msra.mxu0 0.0
        %875 = vmatprep.subr.mxu0 0.0
        %876 = vmatpush1.xpose.msra.mxu0 0.0
        %877 = vmatprep.subr.mxu0 0.0
        %878 = vmatpush1.xpose.msra.mxu0 0.0
        %879 = vmatprep.subr.mxu0 0.0
        %880 = vmatpush1.xpose.msra.mxu0 0.0
        %881 = vmatprep.subr.mxu0 0.0
        %882 = vmatpush1.xpose.msra.mxu0 0.0
        %883 = vmatprep.subr.mxu0 0.0
        %884 = vmatpush1.xpose.msra.mxu0 0.0
        %885 = vmatprep.subr.mxu0 0.0
        %886 = vmatpush1.xpose.msra.mxu0 %v853
        %887 = vmatprep.subr.mxu0 0.0
        %888 = vmatpush2.xpose.msra.mxu0 0.0
        %889 = vmatprep.subr.mxu0 0.0
        %890 = vmatpush2.xpose.msra.mxu0 0.0
        %891 = vmatprep.subr.mxu0 0.0
        %892 = vmatpush2.xpose.msra.mxu0 0.0
        %893 = vmatprep.subr.mxu0 0.0
        %894 = vmatpush2.xpose.msra.mxu0 0.0
        %895 = vmatprep.subr.mxu0 0.0
        %896 = vmatpush2.xpose.msra.mxu0 0.0
        %897 = vmatprep.subr.mxu0 0.0
        %898 = vmatpush2.xpose.msra.mxu0 0.0
        %899 = vmatprep.subr.mxu0 0.0
        %900 = vmatpush2.xpose.msra.mxu0 0.0
        %901 = vmatprep.subr.mxu0 0.0
        %902 = vmatpush2.xpose.msra.mxu0 0.0
        %903 = vmatprep.subr.mxu0 0.0
        %904 = vmatpush2.xpose.msra.mxu0 0.0
        %905 = vmatprep.subr.mxu0 0.0
        %906 = vmatpush2.xpose.msra.mxu0 0.0
        %907 = vmatprep.subr.mxu0 0.0
        %908 = vmatpush2.xpose.msra.mxu0 0.0
        %909 = vmatprep.subr.mxu0 0.0
        %910 = vmatpush2.xpose.msra.mxu0 0.0
        %911 = vmatprep.subr.mxu0 0.0
        %912 = vmatpush2.xpose.msra.mxu0 0.0
        %913 = vmatprep.subr.mxu0 0.0
        %914 = vmatpush2.xpose.msra.mxu0 0.0
        %915 = vmatprep.subr.mxu0 0.0
        %916 = vmatpush2.xpose.msra.mxu0 0.0
        %917 = vmatprep.subr.mxu0 0.0
        %918 = vmatpush2.xpose.msra.mxu0 0.0
        %919 = vmatprep.mubr.f32.mxu0 0.0
        %920 = vmatmul.mubr.f32.gmra.mxu0 %v851
        %v921 = vpop.f32.mrf.mxu0
        %v922 = vadd.f32 0.0, %v921
        %v923 = vpop.f32.mrf.mxu0
        %924 = vdwg.mxu0
        %v925 = vsel %vm628, %v700, -inf
        %926 = vmax.xlane.f32.xlu0 %v925
        %v927 = vpop.xlane.xlu0 %926
        %v928 = vsel %vm628, %v774, -inf
        %929 = vmax.xlane.f32.xlu0 %v928
        %v930 = vpop.xlane.xlu0 %929
        %v931 = vsel %vm628, %v848, -inf
        %932 = vmax.xlane.f32.xlu0 %v931
        %v933 = vpop.xlane.xlu0 %932
        %v934 = vsel %vm628, %v922, -inf
        %935 = vmax.xlane.f32.xlu0 %v934
        %v936 = vpop.xlane.xlu0 %935
        %v937 = vsub.f32 %v700, %v927
        %v938 = vsub.f32 %v774, %v930
        %v939 = vsub.f32 %v848, %v933
        %v940 = vsub.f32 %v922, %v936
        %v941 = vmul.f32 %v937, 1.442695
        %v942 = vpow.pop %v941
        %v943 = vmul.f32 %v938, 1.442695
        %v944 = vpow.pop %v943
        %v945 = vmul.f32 %v939, 1.442695
        %v946 = vpow.pop %v945
        %v947 = vmul.f32 %v940, 1.442695
        %v948 = vpow.pop %v947
        %v949 = vsel %vm628, %v942, 0.0
        %950 = vadd.xlane.f32.xlu0 %v949
        %v951 = vpop.xlane.xlu0 %950
        %v952 = vsel %vm628, %v944, 0.0
        %953 = vadd.xlane.f32.xlu0 %v952
        %v954 = vpop.xlane.xlu0 %953
        %v955 = vsel %vm628, %v946, 0.0
        %956 = vadd.xlane.f32.xlu0 %v955
        %v957 = vpop.xlane.xlu0 %956
        %v958 = vsel %vm628, %v948, 0.0
        %959 = vadd.xlane.f32.xlu0 %v958
        %v960 = vpop.xlane.xlu0 %959
        %v961 = vrcp.pop %v951
        %v962 = vrcp.pop %v954
        %v963 = vrcp.pop %v957
        %v964 = vrcp.pop %v960
        %v965 = vmul.f32 %v942, %v961
        %v966 = vmul.f32 %v944, %v962
        %v967 = vmul.f32 %v946, %v963
        %v968 = vmul.f32 %v948, %v964
        %v970 = vsel %vm628, %v965, 0
        %972 = vmatprep.subr.mxu0 0.0
        %973 = vmatpush1.msra.mxu0 0.0
        %974 = vmatprep.subr.mxu0 0.0
        %975 = vmatpush1.msra.mxu0 0.0
        %976 = vmatprep.subr.mxu0 0.0
        %977 = vmatpush1.msra.mxu0 0.0
        %978 = vmatprep.subr.mxu0 0.0
        %979 = vmatpush1.msra.mxu0 0.0
        %980 = vmatprep.subr.mxu0 0.0
        %981 = vmatpush1.msra.mxu0 0.0
        %982 = vmatprep.subr.mxu0 0.0
        %983 = vmatpush1.msra.mxu0 0.0
        %984 = vmatprep.subr.mxu0 0.0
        %985 = vmatpush1.msra.mxu0 0.0
        %986 = vmatprep.subr.mxu0 0.0
        %987 = vmatpush1.msra.mxu0 0.0
        %988 = vmatprep.subr.mxu0 0.0
        %989 = vmatpush1.msra.mxu0 0.0
        %990 = vmatprep.subr.mxu0 0.0
        %991 = vmatpush1.msra.mxu0 0.0
        %992 = vmatprep.subr.mxu0 0.0
        %993 = vmatpush1.msra.mxu0 0.0
        %994 = vmatprep.subr.mxu0 0.0
        %995 = vmatpush1.msra.mxu0 0.0
        %996 = vmatprep.subr.mxu0 0.0
        %997 = vmatpush1.msra.mxu0 0.0
        %998 = vmatprep.subr.mxu0 0.0
        %999 = vmatpush1.msra.mxu0 0.0
        %1000 = vmatprep.subr.mxu0 0.0
        %1001 = vmatpush1.msra.mxu0 0.0
        %1002 = vmatprep.subr.mxu0 0.0
        %1003 = vmatpush1.msra.mxu0 %v600
        %1004 = vmatprep.subr.mxu0 0.0
        %1005 = vmatpush2.msra.mxu0 0.0
        %1006 = vmatprep.subr.mxu0 0.0
        %1007 = vmatpush2.msra.mxu0 0.0
        %1008 = vmatprep.subr.mxu0 0.0
        %1009 = vmatpush2.msra.mxu0 0.0
        %1010 = vmatprep.subr.mxu0 0.0
        %1011 = vmatpush2.msra.mxu0 0.0
        %1012 = vmatprep.subr.mxu0 0.0
        %1013 = vmatpush2.msra.mxu0 0.0
        %1014 = vmatprep.subr.mxu0 0.0
        %1015 = vmatpush2.msra.mxu0 0.0
        %1016 = vmatprep.subr.mxu0 0.0
        %1017 = vmatpush2.msra.mxu0 0.0
        %1018 = vmatprep.subr.mxu0 0.0
        %1019 = vmatpush2.msra.mxu0 0.0
        %1020 = vmatprep.subr.mxu0 0.0
        %1021 = vmatpush2.msra.mxu0 0.0
        %1022 = vmatprep.subr.mxu0 0.0
        %1023 = vmatpush2.msra.mxu0 0.0
        %1024 = vmatprep.subr.mxu0 0.0
        %1025 = vmatpush2.msra.mxu0 0.0
        %1026 = vmatprep.subr.mxu0 0.0
        %1027 = vmatpush2.msra.mxu0 0.0
        %1028 = vmatprep.subr.mxu0 0.0
        %1029 = vmatpush2.msra.mxu0 0.0
        %1030 = vmatprep.subr.mxu0 0.0
        %1031 = vmatpush2.msra.mxu0 0.0
        %1032 = vmatprep.subr.mxu0 0.0
        %1033 = vmatpush2.msra.mxu0 0.0
        %1034 = vmatprep.subr.mxu0 0.0
        %1035 = vmatpush2.msra.mxu0 0.0
        %1036 = vmatprep.mubr.f32.mxu0 0.0
        %1037 = vmatmul.mubr.f32.gmra.mxu0 %v970
        %v1038 = vpop.f32.mrf.mxu0
        %v1039 = vadd.f32 0.0, %v1038
        %v1040 = vpop.f32.mrf.mxu0
        %1041 = vdwg.mxu0
        %v1043 = vsel %vm628, %v966, 0
        %1045 = vmatprep.subr.mxu0 0.0
        %1046 = vmatpush1.msra.mxu0 0.0
        %1047 = vmatprep.subr.mxu0 0.0
        %1048 = vmatpush1.msra.mxu0 0.0
        %1049 = vmatprep.subr.mxu0 0.0
        %1050 = vmatpush1.msra.mxu0 0.0
        %1051 = vmatprep.subr.mxu0 0.0
        %1052 = vmatpush1.msra.mxu0 0.0
        %1053 = vmatprep.subr.mxu0 0.0
        %1054 = vmatpush1.msra.mxu0 0.0
        %1055 = vmatprep.subr.mxu0 0.0
        %1056 = vmatpush1.msra.mxu0 0.0
        %1057 = vmatprep.subr.mxu0 0.0
        %1058 = vmatpush1.msra.mxu0 0.0
        %1059 = vmatprep.subr.mxu0 0.0
        %1060 = vmatpush1.msra.mxu0 0.0
        %1061 = vmatprep.subr.mxu0 0.0
        %1062 = vmatpush1.msra.mxu0 0.0
        %1063 = vmatprep.subr.mxu0 0.0
        %1064 = vmatpush1.msra.mxu0 0.0
        %1065 = vmatprep.subr.mxu0 0.0
        %1066 = vmatpush1.msra.mxu0 0.0
        %1067 = vmatprep.subr.mxu0 0.0
        %1068 = vmatpush1.msra.mxu0 0.0
        %1069 = vmatprep.subr.mxu0 0.0
        %1070 = vmatpush1.msra.mxu0 0.0
        %1071 = vmatprep.subr.mxu0 0.0
        %1072 = vmatpush1.msra.mxu0 0.0
        %1073 = vmatprep.subr.mxu0 0.0
        %1074 = vmatpush1.msra.mxu0 0.0
        %1075 = vmatprep.subr.mxu0 0.0
        %1076 = vmatpush1.msra.mxu0 %v620
        %1077 = vmatprep.subr.mxu0 0.0
        %1078 = vmatpush2.msra.mxu0 0.0
        %1079 = vmatprep.subr.mxu0 0.0
        %1080 = vmatpush2.msra.mxu0 0.0
        %1081 = vmatprep.subr.mxu0 0.0
        %1082 = vmatpush2.msra.mxu0 0.0
        %1083 = vmatprep.subr.mxu0 0.0
        %1084 = vmatpush2.msra.mxu0 0.0
        %1085 = vmatprep.subr.mxu0 0.0
        %1086 = vmatpush2.msra.mxu0 0.0
        %1087 = vmatprep.subr.mxu0 0.0
        %1088 = vmatpush2.msra.mxu0 0.0
        %1089 = vmatprep.subr.mxu0 0.0
        %1090 = vmatpush2.msra.mxu0 0.0
        %1091 = vmatprep.subr.mxu0 0.0
        %1092 = vmatpush2.msra.mxu0 0.0
        %1093 = vmatprep.subr.mxu0 0.0
        %1094 = vmatpush2.msra.mxu0 0.0
        %1095 = vmatprep.subr.mxu0 0.0
        %1096 = vmatpush2.msra.mxu0 0.0
        %1097 = vmatprep.subr.mxu0 0.0
        %1098 = vmatpush2.msra.mxu0 0.0
        %1099 = vmatprep.subr.mxu0 0.0
        %1100 = vmatpush2.msra.mxu0 0.0
        %1101 = vmatprep.subr.mxu0 0.0
        %1102 = vmatpush2.msra.mxu0 0.0
        %1103 = vmatprep.subr.mxu0 0.0
        %1104 = vmatpush2.msra.mxu0 0.0
        %1105 = vmatprep.subr.mxu0 0.0
        %1106 = vmatpush2.msra.mxu0 0.0
        %1107 = vmatprep.subr.mxu0 0.0
        %1108 = vmatpush2.msra.mxu0 0.0
        %1109 = vmatprep.mubr.f32.mxu0 0.0
        %1110 = vmatmul.mubr.f32.gmra.mxu0 %v1043
        %v1111 = vpop.f32.mrf.mxu0
        %v1112 = vadd.f32 0.0, %v1111
        %v1113 = vpop.f32.mrf.mxu0
        %1114 = vdwg.mxu0
        %v1116 = vsel %vm628, %v967, 0
        %1118 = vmatprep.subr.mxu0 0.0
        %1119 = vmatpush1.msra.mxu0 0.0
        %1120 = vmatprep.subr.mxu0 0.0
        %1121 = vmatpush1.msra.mxu0 0.0
        %1122 = vmatprep.subr.mxu0 0.0
        %1123 = vmatpush1.msra.mxu0 0.0
        %1124 = vmatprep.subr.mxu0 0.0
        %1125 = vmatpush1.msra.mxu0 0.0
        %1126 = vmatprep.subr.mxu0 0.0
        %1127 = vmatpush1.msra.mxu0 0.0
        %1128 = vmatprep.subr.mxu0 0.0
        %1129 = vmatpush1.msra.mxu0 0.0
        %1130 = vmatprep.subr.mxu0 0.0
        %1131 = vmatpush1.msra.mxu0 0.0
        %1132 = vmatprep.subr.mxu0 0.0
        %1133 = vmatpush1.msra.mxu0 0.0
        %1134 = vmatprep.subr.mxu0 0.0
        %1135 = vmatpush1.msra.mxu0 0.0
        %1136 = vmatprep.subr.mxu0 0.0
        %1137 = vmatpush1.msra.mxu0 0.0
        %1138 = vmatprep.subr.mxu0 0.0
        %1139 = vmatpush1.msra.mxu0 0.0
        %1140 = vmatprep.subr.mxu0 0.0
        %1141 = vmatpush1.msra.mxu0 0.0
        %1142 = vmatprep.subr.mxu0 0.0
        %1143 = vmatpush1.msra.mxu0 0.0
        %1144 = vmatprep.subr.mxu0 0.0
        %1145 = vmatpush1.msra.mxu0 0.0
        %1146 = vmatprep.subr.mxu0 0.0
        %1147 = vmatpush1.msra.mxu0 0.0
        %1148 = vmatprep.subr.mxu0 0.0
        %1149 = vmatpush1.msra.mxu0 %v623
        %1150 = vmatprep.subr.mxu0 0.0
        %1151 = vmatpush2.msra.mxu0 0.0
        %1152 = vmatprep.subr.mxu0 0.0
        %1153 = vmatpush2.msra.mxu0 0.0
        %1154 = vmatprep.subr.mxu0 0.0
        %1155 = vmatpush2.msra.mxu0 0.0
        %1156 = vmatprep.subr.mxu0 0.0
        %1157 = vmatpush2.msra.mxu0 0.0
        %1158 = vmatprep.subr.mxu0 0.0
        %1159 = vmatpush2.msra.mxu0 0.0
        %1160 = vmatprep.subr.mxu0 0.0
        %1161 = vmatpush2.msra.mxu0 0.0
        %1162 = vmatprep.subr.mxu0 0.0
        %1163 = vmatpush2.msra.mxu0 0.0
        %1164 = vmatprep.subr.mxu0 0.0
        %1165 = vmatpush2.msra.mxu0 0.0
        %1166 = vmatprep.subr.mxu0 0.0
        %1167 = vmatpush2.msra.mxu0 0.0
        %1168 = vmatprep.subr.mxu0 0.0
        %1169 = vmatpush2.msra.mxu0 0.0
        %1170 = vmatprep.subr.mxu0 0.0
        %1171 = vmatpush2.msra.mxu0 0.0
        %1172 = vmatprep.subr.mxu0 0.0
        %1173 = vmatpush2.msra.mxu0 0.0
        %1174 = vmatprep.subr.mxu0 0.0
        %1175 = vmatpush2.msra.mxu0 0.0
        %1176 = vmatprep.subr.mxu0 0.0
        %1177 = vmatpush2.msra.mxu0 0.0
        %1178 = vmatprep.subr.mxu0 0.0
        %1179 = vmatpush2.msra.mxu0 0.0
        %1180 = vmatprep.subr.mxu0 0.0
        %1181 = vmatpush2.msra.mxu0 0.0
        %1182 = vmatprep.mubr.f32.mxu0 0.0
        %1183 = vmatmul.mubr.f32.gmra.mxu0 %v1116
        %v1184 = vpop.f32.mrf.mxu0
        %v1185 = vadd.f32 0.0, %v1184
        %v1186 = vpop.f32.mrf.mxu0
        %1187 = vdwg.mxu0
        %v1189 = vsel %vm628, %v968, 0
        %1191 = vmatprep.subr.mxu0 0.0
        %1192 = vmatpush1.msra.mxu0 0.0
        %1193 = vmatprep.subr.mxu0 0.0
        %1194 = vmatpush1.msra.mxu0 0.0
        %1195 = vmatprep.subr.mxu0 0.0
        %1196 = vmatpush1.msra.mxu0 0.0
        %1197 = vmatprep.subr.mxu0 0.0
        %1198 = vmatpush1.msra.mxu0 0.0
        %1199 = vmatprep.subr.mxu0 0.0
        %1200 = vmatpush1.msra.mxu0 0.0
        %1201 = vmatprep.subr.mxu0 0.0
        %1202 = vmatpush1.msra.mxu0 0.0
        %1203 = vmatprep.subr.mxu0 0.0
        %1204 = vmatpush1.msra.mxu0 0.0
        %1205 = vmatprep.subr.mxu0 0.0
        %1206 = vmatpush1.msra.mxu0 0.0
        %1207 = vmatprep.subr.mxu0 0.0
        %1208 = vmatpush1.msra.mxu0 0.0
        %1209 = vmatprep.subr.mxu0 0.0
        %1210 = vmatpush1.msra.mxu0 0.0
        %1211 = vmatprep.subr.mxu0 0.0
        %1212 = vmatpush1.msra.mxu0 0.0
        %1213 = vmatprep.subr.mxu0 0.0
        %1214 = vmatpush1.msra.mxu0 0.0
        %1215 = vmatprep.subr.mxu0 0.0
        %1216 = vmatpush1.msra.mxu0 0.0
        %1217 = vmatprep.subr.mxu0 0.0
        %1218 = vmatpush1.msra.mxu0 0.0
        %1219 = vmatprep.subr.mxu0 0.0
        %1220 = vmatpush1.msra.mxu0 0.0
        %1221 = vmatprep.subr.mxu0 0.0
        %1222 = vmatpush1.msra.mxu0 %v626
        %1223 = vmatprep.subr.mxu0 0.0
        %1224 = vmatpush2.msra.mxu0 0.0
        %1225 = vmatprep.subr.mxu0 0.0
        %1226 = vmatpush2.msra.mxu0 0.0
        %1227 = vmatprep.subr.mxu0 0.0
        %1228 = vmatpush2.msra.mxu0 0.0
        %1229 = vmatprep.subr.mxu0 0.0
        %1230 = vmatpush2.msra.mxu0 0.0
        %1231 = vmatprep.subr.mxu0 0.0
        %1232 = vmatpush2.msra.mxu0 0.0
        %1233 = vmatprep.subr.mxu0 0.0
        %1234 = vmatpush2.msra.mxu0 0.0
        %1235 = vmatprep.subr.mxu0 0.0
        %1236 = vmatpush2.msra.mxu0 0.0
        %1237 = vmatprep.subr.mxu0 0.0
        %1238 = vmatpush2.msra.mxu0 0.0
        %1239 = vmatprep.subr.mxu0 0.0
        %1240 = vmatpush2.msra.mxu0 0.0
        %1241 = vmatprep.subr.mxu0 0.0
        %1242 = vmatpush2.msra.mxu0 0.0
        %1243 = vmatprep.subr.mxu0 0.0
        %1244 = vmatpush2.msra.mxu0 0.0
        %1245 = vmatprep.subr.mxu0 0.0
        %1246 = vmatpush2.msra.mxu0 0.0
        %1247 = vmatprep.subr.mxu0 0.0
        %1248 = vmatpush2.msra.mxu0 0.0
        %1249 = vmatprep.subr.mxu0 0.0
        %1250 = vmatpush2.msra.mxu0 0.0
        %1251 = vmatprep.subr.mxu0 0.0
        %1252 = vmatpush2.msra.mxu0 0.0
        %1253 = vmatprep.subr.mxu0 0.0
        %1254 = vmatpush2.msra.mxu0 0.0
        %1255 = vmatprep.mubr.f32.mxu0 0.0
        %1256 = vmatmul.mubr.f32.gmra.mxu0 %v1189
        %v1257 = vpop.f32.mrf.mxu0
        %v1258 = vadd.f32 0.0, %v1257
        %v1259 = vpop.f32.mrf.mxu0
        %1260 = vdwg.mxu0
        %1262 = vrot.lane.b32.xlu0 %v1112, 8
        %v1263 = vpop.permute.xlu0 %1262
        %1266 = vrot.lane.b32.xlu0 %v1185, 16
        %v1267 = vpop.permute.xlu0 %1266
        %1270 = vrot.lane.b32.xlu0 %v1258, 24
        %v1271 = vpop.permute.xlu0 %1270
        %v1273 = vsel %vm628, %v1039, %v1263
        %vm1274 = vcmask 130048
        %v1275 = vsel %vm1274, %v1273, %v1267
        %vm1276 = vcmask 195584
        %v1277 = vsel %vm1276, %v1275, %v1271
        %1278 = vst.msk [vmem:[%s342] sm:$0xff] %vm355, %v1277
        %s1279 = sand.u32 %s170, 1
        %s1280 = scalar_lea.sflag [#allocation4], %s1279
        %s1281 = sand.u32 %s170, 1
        %s1282 = smul.addr %s1281, 8
        %s1283 = scalar_lea.vmem [#allocation10], %s1282
        // Predicated region
        $region57: #{tpu_custom_call.1} parent=39 // pred_check
          %p1284 = pneg %p180
        $region58: #{tpu_custom_call.1} parent=39 // pred_check_branch
          %1286 = sbr.rel (%p1284) target = $region60
        $region59: #{tpu_custom_call.1} parent=39 // pred_region
          %s1288 = ssub.s32 128, 128
          %1289 = vsyncadd %s1280, %s1288
          %s1290 = sadd.s32 %s31, %s30
          %s1291 = smul.addr %s1290, 128
          %s1292 = scalar_lea.hbm %s5, %s1291
          %s1294 = sshll.u32 %s1283, 4
          %s1295 = int_to_ptr.vmem [resolvable:$true] %s1294
          %1297 = dma.vmem_to_hbm [thread:$0]  %s1295, 128, %s1292, %s1280
        $region60: #{tpu_custom_call.1} parent=39 // pred_fallthru
          _
      $region40: #{tpu_custom_call.1} parent=5 // pred_fallthru
        _
      %p1298 = scmp.le.s32.totalorder 2, %s21
      // Predicated region
      $region61: #{tpu_custom_call.1} parent=5 // pred_check
        %p1299 = pneg %p1298
      $region62: #{tpu_custom_call.1} parent=5 // pred_check_branch
        %1301 = sbr.rel (%p1299) target = $region64
      $region63: #{tpu_custom_call.1} parent=5 // pred_region
        %s1302 = ssub.s32 %s21, 2
        // Predicated region
        $region65: #{tpu_custom_call.1} parent=63 // pred_check
          %p1303 = pneg %p186
        $region66: #{tpu_custom_call.1} parent=63 // pred_check_branch
          %1305 = sbr.rel (%p1303) target = $region68
        $region67: #{tpu_custom_call.1} parent=63 // pred_region
          %s1306 = sand.u32 %s171, 1
          %s1307 = scalar_lea.sflag [#allocation4], %s1306
          %s1308 = sand.u32 %s171, 1
          %s1309 = smul.addr %s1308, 8
          %s1310 = scalar_lea.vmem [#allocation10], %s1309
          %1311 = dma.done %s1307, 128
        $region68: #{tpu_custom_call.1} parent=63 // pred_fallthru
          _
      $region64: #{tpu_custom_call.1} parent=5 // pred_fallthru
        _
    $region6: #{tpu_custom_call.1} parent=1 // loop_footer
      %s25 = sadd.s32 1, %s21
    $region7: #{tpu_custom_call.1} parent=1 // loop_footer_branch
      %20 = sbr.rel target = $region3
    $region8: #{tpu_custom_call.1} parent=1 // loop_exit
      _
    %1312 = vsyncpa [#allocation3], 1
    %s1313 = scalar_lea.sflag [#allocation3], 1
    %1314 = vsyncpa %s1313, 1
    %1315 = vsyncpa [#allocation6], 1
    %s1316 = scalar_lea.sflag [#allocation6], 1
    %1317 = vsyncpa %s1316, 1
    %1318 = vsyncpa [#allocation9], 1
    %1319 = vsyncpa [#allocation4], 1
    %s1320 = scalar_lea.sflag [#allocation4], 1
    %1321 = vsyncpa %s1320, 1

</llo_original>
